<compile_context>
chip_gen: v7x
topology: tpu7x:2x2x1
jax: 0.10.0
libtpu: 0.0.40
codegen_flags: <defaults>
</compile_context>

<pallas_src>
import functools

import numpy as np
import jax
import jax.numpy as jnp
from jax import lax
from jax.experimental import pallas as pl
from jax.experimental.pallas import tpu as pltpu


def transformer_kernel(x_ref, mask_ref, wqkg_ref, wo_ref, w1_ref, w2_ref,
                       g2_ref, b2_ref, out_ref, *, heads, batch_tile, seq_len):
    """One grid step processes `batch_tile` batches (rows flattened to B_t*S)."""
    BT, S = batch_tile, seq_len
    x = x_ref[...]                       # (BT*S, F) float32
    F = x.shape[1]
    dk = F // heads

    # --- fused Q/K/G projection: one MXU push with 3F output lanes ---
    qkg = jnp.dot(x, wqkg_ref[...], preferred_element_type=jnp.float32)  # (M, 3F)
    q = qkg[:, 0 * F:1 * F]              # 1/sqrt(dk) already folded into Wq
    ks = qkg[:, 1 * F:2 * F]
    g = qkg[:, 2 * F:3 * F]

    wo = wo_ref[...]

    # Per-batch masked attention.  Loops are tiny static unrolls (BT<=2, heads=4).
    # TODO(synk): at production S, convert to lax.fori_loop(unroll=True) and
    # stream K/V flash-style instead of materializing (S, S) logits per head.
    attn_rows = []
    for bi in range(BT):
        r0 = bi * S
        qb = q[r0:r0 + S, :]                         # (S, F)  sublane slice
        kbT = ks[r0:r0 + S, :].T                     # (F, S)  one transpose per batch
        gb = g[r0:r0 + S, :]                         # (S, F)
        masked = mask_ref[bi] > 0.5                  # (1, S) bool, hoisted out of head loop
        acc = jnp.zeros((S, F), jnp.float32)
        for h in range(heads):
            c0 = h * dk
            # logits: (S, dk) @ (dk, S); kbT sliced sublane-wise (8-aligned)
            logits = jnp.dot(qb[:, c0:c0 + dk], kbT[c0:c0 + dk, :],
                             preferred_element_type=jnp.float32)         # (S, S)
            logits = jnp.where(masked, jnp.float32(-1e9), logits)        # masked_fill
            m = jnp.max(logits, axis=-1, keepdims=True)
            e = jnp.exp(logits - m)
            p = e * pl.reciprocal(jnp.sum(e, axis=-1, keepdims=True))    # EUP, exact
            hv = jnp.dot(p, gb[:, c0:c0 + dk],
                         preferred_element_type=jnp.float32)             # (S, dk)
            # concat(heads) @ Wo  ==  sum_h head_h @ Wo[h*dk:(h+1)*dk, :]
            # -> no lane-dim concatenation, no scratch writes.
            acc = acc + jnp.dot(hv, wo[c0:c0 + dk, :],
                                preferred_element_type=jnp.float32)      # (S, F)
        attn_rows.append(acc)
    attn = attn_rows[0] if BT == 1 else jnp.concatenate(attn_rows, axis=0)

    # Residual 1 (dropout == identity in eval mode)
    resid = x + attn

    # LayerNorm2 (eps = 1e-5, affine); rsqrt goes to the otherwise idle EUP slot
    mu = jnp.mean(resid, axis=-1, keepdims=True)
    var = jnp.mean((resid - mu) ** 2, axis=-1, keepdims=True)
    normed = (resid - mu) * lax.rsqrt(var + jnp.float32(1e-5))
    normed = normed * g2_ref[...] + b2_ref[...]                          # (1,F) broadcast

    # Feed-forward: relu(x @ W1) @ W2, residual 2
    ff1 = jnp.maximum(jnp.dot(normed, w1_ref[...],
                              preferred_element_type=jnp.float32), 0.0)
    out_ref[...] = resid + jnp.dot(ff1, w2_ref[...],
                                   preferred_element_type=jnp.float32)


def transformer_forward(features, id_box, k, params, heads):
    B, S, F = features.shape
    Hff = params["w1"].shape[1]
    dk = F // heads

    # --- wrapper-side (constant-folded) preprocessing ---
    # Fold 1/sqrt(dk) into Wq and fuse Q/K/G weights -> single (F, 3F) matmul.
    wqkg = jnp.concatenate(
        [params["wq"] * jnp.float32(1.0 / np.sqrt(dk)),
         params["wk"],
         params["wg"]], axis=1)
    # key mask: 1.0 where id_box == k, shape (B, 1, S)
    mask = (id_box == k).astype(jnp.float32).reshape(B, 1, S)

    # 2-way batch split keeps both v7x TensorCores busy (one tile per core);
    # on single-TC chips (v5e/v6e) the extra grid step costs ~0.35us.
    grid_b = 2 if (B >= 2 and B % 2 == 0) else 1
    batch_tile = B // grid_b
    M = batch_tile * S

    # Flatten (B, S, F) -> (B*S, F): row-wise ops see more sublanes per matmul.
    x2d = features.reshape(B * S, F)

    kernel = functools.partial(transformer_kernel, heads=heads,
                               batch_tile=batch_tile, seq_len=S)
    out2d = pl.pallas_call(
        kernel,
        out_shape=jax.ShapeDtypeStruct((B * S, F), jnp.float32),
        grid_spec=pltpu.PrefetchScalarGridSpec(
            num_scalar_prefetch=0,
            grid=(grid_b,),
            in_specs=[
                pl.BlockSpec((M, F), lambda b: (b, 0)),                  # activations
                pl.BlockSpec((batch_tile, 1, S), lambda b: (b, 0, 0)),   # key mask
                pl.BlockSpec((F, 3 * F), lambda b: (0, 0)),              # fused Wq|Wk|Wg
                pl.BlockSpec((F, F), lambda b: (0, 0)),                  # Wo
                pl.BlockSpec((F, Hff), lambda b: (0, 0)),                # W_f1
                pl.BlockSpec((Hff, F), lambda b: (0, 0)),                # W_f2
                pl.BlockSpec((1, F), lambda b: (0, 0)),                  # ln2 gamma
                pl.BlockSpec((1, F), lambda b: (0, 0)),                  # ln2 beta
            ],
            out_specs=pl.BlockSpec((M, F), lambda b: (b, 0)),
        ),
        compiler_params=pltpu.CompilerParams(
            dimension_semantics=("parallel",),
            vmem_limit_bytes=32 * 1024 * 1024),
    )(x2d, mask,
      wqkg, params["wo"], params["w1"], params["w2"],
      params["ln2_g"].reshape(1, F), params["ln2_b"].reshape(1, F))
    # TODO(synk): output last dim is F=32 (<128 lanes) -> masked stores; a
    # lane-dense (B, S*F) output layout needs an in-kernel reshape that changes
    # the lane dim, which is not worth the lowering risk at these toy shapes.
    return out2d.reshape(B, S, F)


def reference_forward(features, id_box, k, params, heads):
    """Pure-JAX reference mirroring the PyTorch forward (eval mode)."""
    B, S, F = features.shape
    dk = F // heads
    q = (features @ params["wq"]).reshape(B, S, heads, dk).transpose(0, 2, 1, 3)
    kk = (features @ params["wk"]).reshape(B, S, heads, dk).transpose(0, 2, 1, 3)
    g = (features @ params["wg"]).reshape(B, S, heads, dk).transpose(0, 2, 1, 3)
    logits = jnp.einsum("bhqd,bhkd->bhqk", q, kk) / np.sqrt(dk)
    mask = (id_box == k)[:, None, None, :]
    logits = jnp.where(mask, -1e9, logits)
    p = jax.nn.softmax(logits, axis=-1)
    score = jnp.einsum("bhqk,bhkd->bhqd", p, g)
    concat = score.transpose(0, 2, 1, 3).reshape(B, S, F)
    attn = concat @ params["wo"]
    resid = features + attn
    mu = resid.mean(-1, keepdims=True)
    var = ((resid - mu) ** 2).mean(-1, keepdims=True)
    normed = (resid - mu) / jnp.sqrt(var + 1e-5) * params["ln2_g"] + params["ln2_b"]
    ff1 = jax.nn.relu(normed @ params["w1"])
    return resid + ff1 @ params["w2"]


if __name__ == "__main__":
    heads = 4
    in_features = 32    # F
    out_features = 64   # FFN hidden size
    B, S = 2, 8

    key = jax.random.PRNGKey(0)
    ks = jax.random.split(key, 8)

    def xavier(rng, fan_in, fan_out):
        std = np.sqrt(2.0 / (fan_in + fan_out)).astype(np.float32)
        return jax.random.normal(rng, (fan_in, fan_out), jnp.float32) * std

    params = {
        "wq": xavier(ks[0], in_features, in_features),
        "wk": xavier(ks[1], in_features, in_features),
        "wg": xavier(ks[2], in_features, in_features),
        "wo": xavier(ks[3], in_features, in_features),
        "w1": xavier(ks[4], in_features, out_features),
        "w2": xavier(ks[5], out_features, in_features),
        "ln2_g": jnp.ones((in_features,), jnp.float32),
        "ln2_b": jnp.zeros((in_features,), jnp.float32),
    }

    features = jax.random.normal(ks[6], (B, S, in_features), jnp.float32)
    id_box = jax.random.randint(ks[7], (B, S), 0, 3)
    k_id = 1

    out = transformer_forward(features, id_box, k_id, params, heads)
    out = jax.block_until_ready(out)

    ref = reference_forward(features, id_box, k_id, params, heads)
    assert out.shape == (B, S, in_features)
    assert np.allclose(np.asarray(out), np.asarray(ref), atol=1e-4, rtol=1e-4), (
        "Pallas kernel output mismatch vs JAX reference")

    print("KERNEL_OK")
</pallas_src>

<mosaic_0001>
module attributes {stable_mosaic.version = 11 : i64} {
  func.func @transformer_kernel(%arg0: i32, %arg1: memref<8x32xf32, #tpu.memory_space<vmem>>, %arg2: memref<1x1x8xf32, #tpu.memory_space<vmem>>, %arg3: memref<32x96xf32, #tpu.memory_space<vmem>>, %arg4: memref<32x32xf32, #tpu.memory_space<vmem>>, %arg5: memref<32x64xf32, #tpu.memory_space<vmem>>, %arg6: memref<64x32xf32, #tpu.memory_space<vmem>>, %arg7: memref<1x32xf32, #tpu.memory_space<vmem>>, %arg8: memref<1x32xf32, #tpu.memory_space<vmem>>, %arg9: memref<8x32xf32, #tpu.memory_space<vmem>>) attributes {dimension_semantics = [#tpu.dimension_semantics<parallel>], iteration_bounds = array<i64: 2>, scalar_prefetch = 0 : i64, scratch_operands = 0 : i64, tpu.core_type = #tpu.core_type<tc>, window_params = [{transform_indices = @transform_0, window_bounds = array<i64: 8, 32>}, {transform_indices = @transform_1, window_bounds = array<i64: 1, 1, 8>}, {pipeline_mode = #tpu.pipeline_mode<synchronous>, transform_indices = @transform_2, window_bounds = array<i64: 32, 96>}, {pipeline_mode = #tpu.pipeline_mode<synchronous>, transform_indices = @transform_3, window_bounds = array<i64: 32, 32>}, {pipeline_mode = #tpu.pipeline_mode<synchronous>, transform_indices = @transform_4, window_bounds = array<i64: 32, 64>}, {pipeline_mode = #tpu.pipeline_mode<synchronous>, transform_indices = @transform_5, window_bounds = array<i64: 64, 32>}, {pipeline_mode = #tpu.pipeline_mode<synchronous>, transform_indices = @transform_6, window_bounds = array<i64: 1, 32>}, {pipeline_mode = #tpu.pipeline_mode<synchronous>, transform_indices = @transform_7, window_bounds = array<i64: 1, 32>}, {transform_indices = @transform_8, window_bounds = array<i64: 8, 32>}]} {
    %c0 = arith.constant 0 : index
    %c0_0 = arith.constant 0 : index
    %0 = vector.load %arg1[%c0, %c0_0] : memref<8x32xf32, #tpu.memory_space<vmem>>, vector<8x32xf32>
    %c0_1 = arith.constant 0 : index
    %c0_2 = arith.constant 0 : index
    %1 = vector.load %arg3[%c0_1, %c0_2] : memref<32x96xf32, #tpu.memory_space<vmem>>, vector<32x96xf32>
    %cst = arith.constant dense<0.000000e+00> : vector<8x96xf32>
    %2 = tpu.matmul %0, %1, %cst {dimension_numbers = #tpu.dot_dimension_numbers<[1], [0], [0], [1], [0, 0, 1, 1], [], []>} : vector<8x32xf32>, vector<32x96xf32>, vector<8x96xf32> -> vector<8x96xf32>
    %3 = vector.extract_strided_slice %2 {offsets = [0, 0], sizes = [8, 32], strides = [1, 1]} : vector<8x96xf32> to vector<8x32xf32>
    %4 = vector.extract_strided_slice %2 {offsets = [0, 32], sizes = [8, 32], strides = [1, 1]} : vector<8x96xf32> to vector<8x32xf32>
    %5 = vector.extract_strided_slice %2 {offsets = [0, 64], sizes = [8, 32], strides = [1, 1]} : vector<8x96xf32> to vector<8x32xf32>
    %c0_3 = arith.constant 0 : index
    %c0_4 = arith.constant 0 : index
    %6 = vector.load %arg4[%c0_3, %c0_4] : memref<32x32xf32, #tpu.memory_space<vmem>>, vector<32x32xf32>
    %7 = tpu.transpose %4, [1, 0] : vector<8x32xf32> -> vector<32x8xf32>
    %c0_5 = arith.constant 0 : index
    %c0_6 = arith.constant 0 : index
    %c0_7 = arith.constant 0 : index
    %8 = vector.load %arg2[%c0_5, %c0_6, %c0_7] : memref<1x1x8xf32, #tpu.memory_space<vmem>>, vector<1x1x8xf32>
    %9 = vector.shape_cast %8 : vector<1x1x8xf32> to vector<1x8xf32>
    %cst_8 = arith.constant 5.000000e-01 : f32
    %10 = vector.broadcast %cst_8 : f32 to vector<1x8xf32>
    %11 = arith.cmpf ogt, %9, %10 : vector<1x8xf32>
    %cst_9 = arith.constant 0.000000e+00 : f32
    %12 = vector.broadcast %cst_9 : f32 to vector<8x32xf32>
    %13 = vector.extract_strided_slice %3 {offsets = [0, 0], sizes = [8, 8], strides = [1, 1]} : vector<8x32xf32> to vector<8x8xf32>
    %14 = vector.extract_strided_slice %7 {offsets = [0, 0], sizes = [8, 8], strides = [1, 1]} : vector<32x8xf32> to vector<8x8xf32>
    %cst_10 = arith.constant dense<0.000000e+00> : vector<8x8xf32>
    %15 = tpu.matmul %13, %14, %cst_10 {dimension_numbers = #tpu.dot_dimension_numbers<[1], [0], [0], [1], [0, 0, 1, 1], [], []>} : vector<8x8xf32>, vector<8x8xf32>, vector<8x8xf32> -> vector<8x8xf32>
    %cst_11 = arith.constant -1.000000e+09 : f32
    %16 = vector.shape_cast %11 : vector<1x8xi1> to vector<1x8xi1>
    %17 = vector.broadcast %16 : vector<1x8xi1> to vector<8x8xi1>
    %18 = vector.broadcast %cst_11 : f32 to vector<8x8xf32>
    %19 = arith.select %17, %18, %15 : vector<8x8xi1>, vector<8x8xf32>
    %cst_12 = arith.constant dense<0xFF800000> : vector<8xf32>
    %20 = vector.multi_reduction <maximumf>, %19, %cst_12 [1] : vector<8x8xf32> to vector<8xf32>
    %21 = vector.shape_cast %20 : vector<8xf32> to vector<8x1xf32>
    %22 = vector.broadcast %21 : vector<8x1xf32> to vector<8x8xf32>
    %23 = arith.subf %19, %22 : vector<8x8xf32>
    %24 = math.exp %23 : vector<8x8xf32>
    %cst_13 = arith.constant dense<0.000000e+00> : vector<8xf32>
    %25 = vector.multi_reduction <add>, %24, %cst_13 [1] : vector<8x8xf32> to vector<8xf32>
    %26 = vector.shape_cast %25 : vector<8xf32> to vector<8x1xf32>
    %27 = tpu.reciprocal %26 : vector<8x1xf32> -> vector<8x1xf32>
    %28 = vector.broadcast %27 : vector<8x1xf32> to vector<8x8xf32>
    %29 = arith.mulf %24, %28 : vector<8x8xf32>
    %30 = vector.extract_strided_slice %5 {offsets = [0, 0], sizes = [8, 8], strides = [1, 1]} : vector<8x32xf32> to vector<8x8xf32>
    %cst_14 = arith.constant dense<0.000000e+00> : vector<8x8xf32>
    %31 = tpu.matmul %29, %30, %cst_14 {dimension_numbers = #tpu.dot_dimension_numbers<[1], [0], [0], [1], [0, 0, 1, 1], [], []>} : vector<8x8xf32>, vector<8x8xf32>, vector<8x8xf32> -> vector<8x8xf32>
    %32 = vector.extract_strided_slice %6 {offsets = [0, 0], sizes = [8, 32], strides = [1, 1]} : vector<32x32xf32> to vector<8x32xf32>
    %cst_15 = arith.constant dense<0.000000e+00> : vector<8x32xf32>
    %33 = tpu.matmul %31, %32, %cst_15 {dimension_numbers = #tpu.dot_dimension_numbers<[1], [0], [0], [1], [0, 0, 1, 1], [], []>} : vector<8x8xf32>, vector<8x32xf32>, vector<8x32xf32> -> vector<8x32xf32>
    %34 = arith.addf %12, %33 : vector<8x32xf32>
    %35 = vector.extract_strided_slice %3 {offsets = [0, 8], sizes = [8, 8], strides = [1, 1]} : vector<8x32xf32> to vector<8x8xf32>
    %36 = vector.extract_strided_slice %7 {offsets = [8, 0], sizes = [8, 8], strides = [1, 1]} : vector<32x8xf32> to vector<8x8xf32>
    %cst_16 = arith.constant dense<0.000000e+00> : vector<8x8xf32>
    %37 = tpu.matmul %35, %36, %cst_16 {dimension_numbers = #tpu.dot_dimension_numbers<[1], [0], [0], [1], [0, 0, 1, 1], [], []>} : vector<8x8xf32>, vector<8x8xf32>, vector<8x8xf32> -> vector<8x8xf32>
    %cst_17 = arith.constant -1.000000e+09 : f32
    %38 = vector.shape_cast %11 : vector<1x8xi1> to vector<1x8xi1>
    %39 = vector.broadcast %38 : vector<1x8xi1> to vector<8x8xi1>
    %40 = vector.broadcast %cst_17 : f32 to vector<8x8xf32>
    %41 = arith.select %39, %40, %37 : vector<8x8xi1>, vector<8x8xf32>
    %cst_18 = arith.constant dense<0xFF800000> : vector<8xf32>
    %42 = vector.multi_reduction <maximumf>, %41, %cst_18 [1] : vector<8x8xf32> to vector<8xf32>
    %43 = vector.shape_cast %42 : vector<8xf32> to vector<8x1xf32>
    %44 = vector.broadcast %43 : vector<8x1xf32> to vector<8x8xf32>
    %45 = arith.subf %41, %44 : vector<8x8xf32>
    %46 = math.exp %45 : vector<8x8xf32>
    %cst_19 = arith.constant dense<0.000000e+00> : vector<8xf32>
    %47 = vector.multi_reduction <add>, %46, %cst_19 [1] : vector<8x8xf32> to vector<8xf32>
    %48 = vector.shape_cast %47 : vector<8xf32> to vector<8x1xf32>
    %49 = tpu.reciprocal %48 : vector<8x1xf32> -> vector<8x1xf32>
    %50 = vector.broadcast %49 : vector<8x1xf32> to vector<8x8xf32>
    %51 = arith.mulf %46, %50 : vector<8x8xf32>
    %52 = vector.extract_strided_slice %5 {offsets = [0, 8], sizes = [8, 8], strides = [1, 1]} : vector<8x32xf32> to vector<8x8xf32>
    %cst_20 = arith.constant dense<0.000000e+00> : vector<8x8xf32>
    %53 = tpu.matmul %51, %52, %cst_20 {dimension_numbers = #tpu.dot_dimension_numbers<[1], [0], [0], [1], [0, 0, 1, 1], [], []>} : vector<8x8xf32>, vector<8x8xf32>, vector<8x8xf32> -> vector<8x8xf32>
    %54 = vector.extract_strided_slice %6 {offsets = [8, 0], sizes = [8, 32], strides = [1, 1]} : vector<32x32xf32> to vector<8x32xf32>
    %cst_21 = arith.constant dense<0.000000e+00> : vector<8x32xf32>
    %55 = tpu.matmul %53, %54, %cst_21 {dimension_numbers = #tpu.dot_dimension_numbers<[1], [0], [0], [1], [0, 0, 1, 1], [], []>} : vector<8x8xf32>, vector<8x32xf32>, vector<8x32xf32> -> vector<8x32xf32>
    %56 = arith.addf %34, %55 : vector<8x32xf32>
    %57 = vector.extract_strided_slice %3 {offsets = [0, 16], sizes = [8, 8], strides = [1, 1]} : vector<8x32xf32> to vector<8x8xf32>
    %58 = vector.extract_strided_slice %7 {offsets = [16, 0], sizes = [8, 8], strides = [1, 1]} : vector<32x8xf32> to vector<8x8xf32>
    %cst_22 = arith.constant dense<0.000000e+00> : vector<8x8xf32>
    %59 = tpu.matmul %57, %58, %cst_22 {dimension_numbers = #tpu.dot_dimension_numbers<[1], [0], [0], [1], [0, 0, 1, 1], [], []>} : vector<8x8xf32>, vector<8x8xf32>, vector<8x8xf32> -> vector<8x8xf32>
    %cst_23 = arith.constant -1.000000e+09 : f32
    %60 = vector.shape_cast %11 : vector<1x8xi1> to vector<1x8xi1>
    %61 = vector.broadcast %60 : vector<1x8xi1> to vector<8x8xi1>
    %62 = vector.broadcast %cst_23 : f32 to vector<8x8xf32>
    %63 = arith.select %61, %62, %59 : vector<8x8xi1>, vector<8x8xf32>
    %cst_24 = arith.constant dense<0xFF800000> : vector<8xf32>
    %64 = vector.multi_reduction <maximumf>, %63, %cst_24 [1] : vector<8x8xf32> to vector<8xf32>
    %65 = vector.shape_cast %64 : vector<8xf32> to vector<8x1xf32>
    %66 = vector.broadcast %65 : vector<8x1xf32> to vector<8x8xf32>
    %67 = arith.subf %63, %66 : vector<8x8xf32>
    %68 = math.exp %67 : vector<8x8xf32>
    %cst_25 = arith.constant dense<0.000000e+00> : vector<8xf32>
    %69 = vector.multi_reduction <add>, %68, %cst_25 [1] : vector<8x8xf32> to vector<8xf32>
    %70 = vector.shape_cast %69 : vector<8xf32> to vector<8x1xf32>
    %71 = tpu.reciprocal %70 : vector<8x1xf32> -> vector<8x1xf32>
    %72 = vector.broadcast %71 : vector<8x1xf32> to vector<8x8xf32>
    %73 = arith.mulf %68, %72 : vector<8x8xf32>
    %74 = vector.extract_strided_slice %5 {offsets = [0, 16], sizes = [8, 8], strides = [1, 1]} : vector<8x32xf32> to vector<8x8xf32>
    %cst_26 = arith.constant dense<0.000000e+00> : vector<8x8xf32>
    %75 = tpu.matmul %73, %74, %cst_26 {dimension_numbers = #tpu.dot_dimension_numbers<[1], [0], [0], [1], [0, 0, 1, 1], [], []>} : vector<8x8xf32>, vector<8x8xf32>, vector<8x8xf32> -> vector<8x8xf32>
    %76 = vector.extract_strided_slice %6 {offsets = [16, 0], sizes = [8, 32], strides = [1, 1]} : vector<32x32xf32> to vector<8x32xf32>
    %cst_27 = arith.constant dense<0.000000e+00> : vector<8x32xf32>
    %77 = tpu.matmul %75, %76, %cst_27 {dimension_numbers = #tpu.dot_dimension_numbers<[1], [0], [0], [1], [0, 0, 1, 1], [], []>} : vector<8x8xf32>, vector<8x32xf32>, vector<8x32xf32> -> vector<8x32xf32>
    %78 = arith.addf %56, %77 : vector<8x32xf32>
    %79 = vector.extract_strided_slice %3 {offsets = [0, 24], sizes = [8, 8], strides = [1, 1]} : vector<8x32xf32> to vector<8x8xf32>
    %80 = vector.extract_strided_slice %7 {offsets = [24, 0], sizes = [8, 8], strides = [1, 1]} : vector<32x8xf32> to vector<8x8xf32>
    %cst_28 = arith.constant dense<0.000000e+00> : vector<8x8xf32>
    %81 = tpu.matmul %79, %80, %cst_28 {dimension_numbers = #tpu.dot_dimension_numbers<[1], [0], [0], [1], [0, 0, 1, 1], [], []>} : vector<8x8xf32>, vector<8x8xf32>, vector<8x8xf32> -> vector<8x8xf32>
    %cst_29 = arith.constant -1.000000e+09 : f32
    %82 = vector.shape_cast %11 : vector<1x8xi1> to vector<1x8xi1>
    %83 = vector.broadcast %82 : vector<1x8xi1> to vector<8x8xi1>
    %84 = vector.broadcast %cst_29 : f32 to vector<8x8xf32>
    %85 = arith.select %83, %84, %81 : vector<8x8xi1>, vector<8x8xf32>
    %cst_30 = arith.constant dense<0xFF800000> : vector<8xf32>
    %86 = vector.multi_reduction <maximumf>, %85, %cst_30 [1] : vector<8x8xf32> to vector<8xf32>
    %87 = vector.shape_cast %86 : vector<8xf32> to vector<8x1xf32>
    %88 = vector.broadcast %87 : vector<8x1xf32> to vector<8x8xf32>
    %89 = arith.subf %85, %88 : vector<8x8xf32>
    %90 = math.exp %89 : vector<8x8xf32>
    %cst_31 = arith.constant dense<0.000000e+00> : vector<8xf32>
    %91 = vector.multi_reduction <add>, %90, %cst_31 [1] : vector<8x8xf32> to vector<8xf32>
    %92 = vector.shape_cast %91 : vector<8xf32> to vector<8x1xf32>
    %93 = tpu.reciprocal %92 : vector<8x1xf32> -> vector<8x1xf32>
    %94 = vector.broadcast %93 : vector<8x1xf32> to vector<8x8xf32>
    %95 = arith.mulf %90, %94 : vector<8x8xf32>
    %96 = vector.extract_strided_slice %5 {offsets = [0, 24], sizes = [8, 8], strides = [1, 1]} : vector<8x32xf32> to vector<8x8xf32>
    %cst_32 = arith.constant dense<0.000000e+00> : vector<8x8xf32>
    %97 = tpu.matmul %95, %96, %cst_32 {dimension_numbers = #tpu.dot_dimension_numbers<[1], [0], [0], [1], [0, 0, 1, 1], [], []>} : vector<8x8xf32>, vector<8x8xf32>, vector<8x8xf32> -> vector<8x8xf32>
    %98 = vector.extract_strided_slice %6 {offsets = [24, 0], sizes = [8, 32], strides = [1, 1]} : vector<32x32xf32> to vector<8x32xf32>
    %cst_33 = arith.constant dense<0.000000e+00> : vector<8x32xf32>
    %99 = tpu.matmul %97, %98, %cst_33 {dimension_numbers = #tpu.dot_dimension_numbers<[1], [0], [0], [1], [0, 0, 1, 1], [], []>} : vector<8x8xf32>, vector<8x32xf32>, vector<8x32xf32> -> vector<8x32xf32>
    %100 = arith.addf %78, %99 : vector<8x32xf32>
    %101 = arith.addf %0, %100 : vector<8x32xf32>
    %cst_34 = arith.constant dense<0.000000e+00> : vector<8xf32>
    %102 = vector.multi_reduction <add>, %101, %cst_34 [1] : vector<8x32xf32> to vector<8xf32>
    %103 = vector.shape_cast %102 : vector<8xf32> to vector<8x1xf32>
    %cst_35 = arith.constant 3.200000e+01 : f32
    %104 = vector.broadcast %cst_35 : f32 to vector<8x1xf32>
    %105 = arith.divf %103, %104 : vector<8x1xf32>
    %106 = vector.broadcast %105 : vector<8x1xf32> to vector<8x32xf32>
    %107 = arith.subf %101, %106 : vector<8x32xf32>
    %108 = arith.mulf %107, %107 : vector<8x32xf32>
    %cst_36 = arith.constant dense<0.000000e+00> : vector<8xf32>
    %109 = vector.multi_reduction <add>, %108, %cst_36 [1] : vector<8x32xf32> to vector<8xf32>
    %110 = vector.shape_cast %109 : vector<8xf32> to vector<8x1xf32>
    %cst_37 = arith.constant 3.200000e+01 : f32
    %111 = vector.broadcast %cst_37 : f32 to vector<8x1xf32>
    %112 = arith.divf %110, %111 : vector<8x1xf32>
    %113 = vector.broadcast %105 : vector<8x1xf32> to vector<8x32xf32>
    %114 = arith.subf %101, %113 : vector<8x32xf32>
    %cst_38 = arith.constant 9.99999974E-6 : f32
    %115 = vector.broadcast %cst_38 : f32 to vector<8x1xf32>
    %116 = arith.addf %112, %115 : vector<8x1xf32>
    %117 = math.rsqrt %116 : vector<8x1xf32>
    %118 = vector.broadcast %117 : vector<8x1xf32> to vector<8x32xf32>
    %119 = arith.mulf %114, %118 : vector<8x32xf32>
    %c0_39 = arith.constant 0 : index
    %c0_40 = arith.constant 0 : index
    %120 = vector.load %arg7[%c0_39, %c0_40] : memref<1x32xf32, #tpu.memory_space<vmem>>, vector<1x32xf32>
    %121 = vector.broadcast %120 : vector<1x32xf32> to vector<8x32xf32>
    %122 = arith.mulf %119, %121 : vector<8x32xf32>
    %c0_41 = arith.constant 0 : index
    %c0_42 = arith.constant 0 : index
    %123 = vector.load %arg8[%c0_41, %c0_42] : memref<1x32xf32, #tpu.memory_space<vmem>>, vector<1x32xf32>
    %124 = vector.broadcast %123 : vector<1x32xf32> to vector<8x32xf32>
    %125 = arith.addf %122, %124 : vector<8x32xf32>
    %c0_43 = arith.constant 0 : index
    %c0_44 = arith.constant 0 : index
    %126 = vector.load %arg5[%c0_43, %c0_44] : memref<32x64xf32, #tpu.memory_space<vmem>>, vector<32x64xf32>
    %cst_45 = arith.constant dense<0.000000e+00> : vector<8x64xf32>
    %127 = tpu.matmul %125, %126, %cst_45 {dimension_numbers = #tpu.dot_dimension_numbers<[1], [0], [0], [1], [0, 0, 1, 1], [], []>} : vector<8x32xf32>, vector<32x64xf32>, vector<8x64xf32> -> vector<8x64xf32>
    %cst_46 = arith.constant 0.000000e+00 : f32
    %128 = vector.broadcast %cst_46 : f32 to vector<8x64xf32>
    %129 = arith.maximumf %127, %128 : vector<8x64xf32>
    %c0_47 = arith.constant 0 : index
    %c0_48 = arith.constant 0 : index
    %130 = vector.load %arg6[%c0_47, %c0_48] : memref<64x32xf32, #tpu.memory_space<vmem>>, vector<64x32xf32>
    %cst_49 = arith.constant dense<0.000000e+00> : vector<8x32xf32>
    %131 = tpu.matmul %129, %130, %cst_49 {dimension_numbers = #tpu.dot_dimension_numbers<[1], [0], [0], [1], [0, 0, 1, 1], [], []>} : vector<8x64xf32>, vector<64x32xf32>, vector<8x32xf32> -> vector<8x32xf32>
    %132 = arith.addf %101, %131 : vector<8x32xf32>
    %c0_50 = arith.constant 0 : index
    %c0_51 = arith.constant 0 : index
    %133 = vector.load %arg9[%c0_50, %c0_51] : memref<8x32xf32, #tpu.memory_space<vmem>>, vector<8x32xf32>
    tpu.vector_store %arg9[%c0_50, %c0_51], %132 {strides = array<i32>} : memref<8x32xf32, #tpu.memory_space<vmem>>, vector<8x32xf32>,
    return
  }
  func.func @transform_0(%arg0: i32) -> (i32, i32) {
    %c0_i32 = arith.constant 0 : i32
    %c0_i32_0 = arith.constant 0 : i32
    return %arg0, %c0_i32 : i32, i32
  }
  func.func @transform_1(%arg0: i32) -> (i32, i32, i32) {
    %c0_i32 = arith.constant 0 : i32
    %c0_i32_0 = arith.constant 0 : i32
    %c0_i32_1 = arith.constant 0 : i32
    return %arg0, %c0_i32, %c0_i32_0 : i32, i32, i32
  }
  func.func @transform_2(%arg0: i32) -> (i32, i32) {
    %c0_i32 = arith.constant 0 : i32
    %c0_i32_0 = arith.constant 0 : i32
    %c0_i32_1 = arith.constant 0 : i32
    return %c0_i32, %c0_i32_0 : i32, i32
  }
  func.func @transform_3(%arg0: i32) -> (i32, i32) {
    %c0_i32 = arith.constant 0 : i32
    %c0_i32_0 = arith.constant 0 : i32
    %c0_i32_1 = arith.constant 0 : i32
    return %c0_i32, %c0_i32_0 : i32, i32
  }
  func.func @transform_4(%arg0: i32) -> (i32, i32) {
    %c0_i32 = arith.constant 0 : i32
    %c0_i32_0 = arith.constant 0 : i32
    %c0_i32_1 = arith.constant 0 : i32
    return %c0_i32, %c0_i32_0 : i32, i32
  }
  func.func @transform_5(%arg0: i32) -> (i32, i32) {
    %c0_i32 = arith.constant 0 : i32
    %c0_i32_0 = arith.constant 0 : i32
    %c0_i32_1 = arith.constant 0 : i32
    return %c0_i32, %c0_i32_0 : i32, i32
  }
  func.func @transform_6(%arg0: i32) -> (i32, i32) {
    %c0_i32 = arith.constant 0 : i32
    %c0_i32_0 = arith.constant 0 : i32
    %c0_i32_1 = arith.constant 0 : i32
    return %c0_i32, %c0_i32_0 : i32, i32
  }
  func.func @transform_7(%arg0: i32) -> (i32, i32) {
    %c0_i32 = arith.constant 0 : i32
    %c0_i32_0 = arith.constant 0 : i32
    %c0_i32_1 = arith.constant 0 : i32
    return %c0_i32, %c0_i32_0 : i32, i32
  }
  func.func @transform_8(%arg0: i32) -> (i32, i32) {
    %c0_i32 = arith.constant 0 : i32
    %c0_i32_0 = arith.constant 0 : i32
    return %arg0, %c0_i32 : i32, i32
  }
}

</mosaic_0001>

<llo_original>
// kernel: tpu_custom_call.1
$region0: #{tpu_custom_call.1}
  #allocation0 [shape = 'u32[]', space=smem, size = 0x4, offset = 0x4, fixed_abs, tag = 'smem constant byte address 0x4 - core index']
  #allocation1 [shape = 'u32[144,128]{1,0:T(1,128)}', space=vmem, size = 0x12000, scoped, tag = 'internal scratch']
  %s0 = inlined_call_operand.hbm [shape: f32[16,32], index: 0, kind: input, shape index: {}]
  %s1 = inlined_call_operand.vmem [shape: f32[2,1,8], index: 1, kind: input, shape index: {}]
  %s2 = inlined_call_operand.vmem [shape: f32[32,96], index: 2, kind: input, shape index: {}]
  %s3 = inlined_call_operand.vmem [shape: f32[32,32], index: 3, kind: input, shape index: {}]
  %s4 = inlined_call_operand.vmem [shape: f32[32,64], index: 4, kind: input, shape index: {}]
  %s5 = inlined_call_operand.vmem [shape: f32[64,32], index: 5, kind: input, shape index: {}]
  %s6 = inlined_call_operand.vmem [shape: f32[1,32], index: 6, kind: input, shape index: {}]
  %s7 = inlined_call_operand.vmem [shape: f32[1,32], index: 7, kind: input, shape index: {}]
  %s8 = inlined_call_operand.hbm [shape: f32[16,32], index: 8, kind: output, shape index: {}]
  %s9 = sld [smem:[#allocation0]]
  $region69: #{tpu_custom_call.1} parent=0
    _
  %s11 = ssub.s32 1, %s9
  %s12 = scalar_select 0, %s11, %s9
  $region1: #{tpu_custom_call.1} parent=0
    #allocation2 [shape = 'u8[8192]{0}', space=vmem, size = 0x2000, scoped, tag = 'input window, operand 0']
    #allocation3 [shape = 's32[2]{0}', space=sflag, size = 0x8, scoped, tag = 'scoped memory for tpu_custom_call.1']
    #allocation4 [shape = 's32[2]{0}', space=sflag, size = 0x8, scoped, tag = 'scoped memory for tpu_custom_call.1']
    #allocation5 [shape = 'u8[8192]{0}', space=vmem, size = 0x2000, scoped, tag = 'output window, operand 0']
    %13 = vsyncpa [#allocation3], 0
    %s14 = scalar_lea.sflag [#allocation3], 1
    %15 = vsyncpa %s14, 0
    %16 = vsyncpa [#allocation4], 0
    %s17 = scalar_lea.sflag [#allocation4], 1
    %18 = vsyncpa %s17, 0
    loop: start=0, step=1, limit=4
    $region2: #{tpu_custom_call.1} parent=1 // loop_pre_header
      _
    $region3: #{tpu_custom_call.1} parent=1 // loop_header
      %s20 = sphi 0, %s24
      %p21 = scmp.ge.s32.totalorder %s20, 4
      %s30 = sphi 0, %s32
      %s33 = sphi 0, %s30
      %s34 = sphi 0, %s33
      %s50 = sphi 0, %s34
      %s56 = sphi 0, %s58
      %s59 = sphi 0, %s56
      %s60 = sphi 0, %s59
      %s76 = sphi 0, %s60
      %s80 = sphi 0, %s80
      %s82 = sphi 0, %s80
      %s83 = sphi 0, %s82
      %s97 = sphi 0, %s83
      %s101 = sphi 0, %s101
      %s103 = sphi 0, %s101
      %s104 = sphi 0, %s103
      %s118 = sphi 0, %s104
      %s122 = sphi 0, %s122
      %s124 = sphi 0, %s122
      %s125 = sphi 0, %s124
      %s139 = sphi 0, %s125
      %s143 = sphi 0, %s143
      %s145 = sphi 0, %s143
      %s146 = sphi 0, %s145
      %s160 = sphi 0, %s146
      %s164 = sphi 0, %s164
      %s166 = sphi 0, %s164
      %s167 = sphi 0, %s166
      %s181 = sphi 0, %s167
      %s185 = sphi 0, %s185
      %s187 = sphi 0, %s185
      %s188 = sphi 0, %s187
      %s202 = sphi 0, %s188
      %s208 = sphi 0, %s210
      %s211 = sphi 0, %s208
      %s212 = sphi 0, %s211
      %s228 = sphi 0, %s212
    $region4: #{tpu_custom_call.1} parent=1 // loop_header_branch
      %23 = sbr.rel (%p21) target = $region8
    $region5: #{tpu_custom_call.1} parent=1 // loop_body
      %s25 = ssub.s32 %s20, 1
      %s26 = ssub.s32 %s20, 2
      %s27 = sadd.s32 %s20, 1
      %s28 = ssub.s32 %s20, %s27
      %p29 = scmp.eq.s32.totalorder %s28, 0
      %s31 = sadd.s32 %s30, 1
      %s32 = scalar_select %p29, %s30, %s31
      %p35 = pneg %p29
      %p36 = scmp.eq.s32.totalorder %s20, 1
      %p37 = por %p35, %p36
      %p38 = scmp.ne.s32.totalorder %s30, %s33
      %p39 = scmp.eq.s32.totalorder %s20, 0
      %p40 = por %p38, %p39
      %p41 = scmp.ne.s32.totalorder %s30, %s33
      %p42 = scmp.eq.s32.totalorder %s25, 1
      %p43 = por %p41, %p42
      %p44 = scmp.ne.s32.totalorder %s33, %s34
      %p45 = scmp.eq.s32.totalorder %s25, 0
      %p46 = por %p44, %p45
      %p47 = scmp.ne.s32.totalorder %s33, %s34
      %p48 = scmp.eq.s32.totalorder %s26, 1
      %p49 = por %p47, %p48
      %p51 = scmp.ne.s32.totalorder %s34, %s50
      %p52 = scmp.eq.s32.totalorder %s26, 0
      %p53 = por %p51, %p52
      %s54 = ssub.s32 %s20, %s27
      %p55 = scmp.eq.s32.totalorder %s54, 0
      %s57 = sadd.s32 %s56, 1
      %s58 = scalar_select %p55, %s56, %s57
      %p61 = pneg %p55
      %p62 = scmp.eq.s32.totalorder %s20, 1
      %p63 = por %p61, %p62
      %p64 = scmp.ne.s32.totalorder %s56, %s59
      %p65 = scmp.eq.s32.totalorder %s20, 0
      %p66 = por %p64, %p65
      %p67 = scmp.ne.s32.totalorder %s56, %s59
      %p68 = scmp.eq.s32.totalorder %s25, 1
      %p69 = por %p67, %p68
      %p70 = scmp.ne.s32.totalorder %s59, %s60
      %p71 = scmp.eq.s32.totalorder %s25, 0
      %p72 = por %p70, %p71
      %p73 = scmp.ne.s32.totalorder %s59, %s60
      %p74 = scmp.eq.s32.totalorder %s26, 1
      %p75 = por %p73, %p74
      %p77 = scmp.ne.s32.totalorder %s60, %s76
      %p78 = scmp.eq.s32.totalorder %s26, 0
      %p79 = por %p77, %p78
      %s81 = sadd.s32 %s80, 1
      %p84 = scmp.eq.s32.totalorder %s20, 1
      %p85 = scmp.ne.s32.totalorder %s80, %s82
      %p86 = scmp.eq.s32.totalorder %s20, 0
      %p87 = por %p85, %p86
      %p88 = scmp.ne.s32.totalorder %s80, %s82
      %p89 = scmp.eq.s32.totalorder %s25, 1
      %p90 = por %p88, %p89
      %p91 = scmp.ne.s32.totalorder %s82, %s83
      %p92 = scmp.eq.s32.totalorder %s25, 0
      %p93 = por %p91, %p92
      %p94 = scmp.ne.s32.totalorder %s82, %s83
      %p95 = scmp.eq.s32.totalorder %s26, 1
      %p96 = por %p94, %p95
      %p98 = scmp.ne.s32.totalorder %s83, %s97
      %p99 = scmp.eq.s32.totalorder %s26, 0
      %p100 = por %p98, %p99
      %s102 = sadd.s32 %s101, 1
      %p105 = scmp.eq.s32.totalorder %s20, 1
      %p106 = scmp.ne.s32.totalorder %s101, %s103
      %p107 = scmp.eq.s32.totalorder %s20, 0
      %p108 = por %p106, %p107
      %p109 = scmp.ne.s32.totalorder %s101, %s103
      %p110 = scmp.eq.s32.totalorder %s25, 1
      %p111 = por %p109, %p110
      %p112 = scmp.ne.s32.totalorder %s103, %s104
      %p113 = scmp.eq.s32.totalorder %s25, 0
      %p114 = por %p112, %p113
      %p115 = scmp.ne.s32.totalorder %s103, %s104
      %p116 = scmp.eq.s32.totalorder %s26, 1
      %p117 = por %p115, %p116
      %p119 = scmp.ne.s32.totalorder %s104, %s118
      %p120 = scmp.eq.s32.totalorder %s26, 0
      %p121 = por %p119, %p120
      %s123 = sadd.s32 %s122, 1
      %p126 = scmp.eq.s32.totalorder %s20, 1
      %p127 = scmp.ne.s32.totalorder %s122, %s124
      %p128 = scmp.eq.s32.totalorder %s20, 0
      %p129 = por %p127, %p128
      %p130 = scmp.ne.s32.totalorder %s122, %s124
      %p131 = scmp.eq.s32.totalorder %s25, 1
      %p132 = por %p130, %p131
      %p133 = scmp.ne.s32.totalorder %s124, %s125
      %p134 = scmp.eq.s32.totalorder %s25, 0
      %p135 = por %p133, %p134
      %p136 = scmp.ne.s32.totalorder %s124, %s125
      %p137 = scmp.eq.s32.totalorder %s26, 1
      %p138 = por %p136, %p137
      %p140 = scmp.ne.s32.totalorder %s125, %s139
      %p141 = scmp.eq.s32.totalorder %s26, 0
      %p142 = por %p140, %p141
      %s144 = sadd.s32 %s143, 1
      %p147 = scmp.eq.s32.totalorder %s20, 1
      %p148 = scmp.ne.s32.totalorder %s143, %s145
      %p149 = scmp.eq.s32.totalorder %s20, 0
      %p150 = por %p148, %p149
      %p151 = scmp.ne.s32.totalorder %s143, %s145
      %p152 = scmp.eq.s32.totalorder %s25, 1
      %p153 = por %p151, %p152
      %p154 = scmp.ne.s32.totalorder %s145, %s146
      %p155 = scmp.eq.s32.totalorder %s25, 0
      %p156 = por %p154, %p155
      %p157 = scmp.ne.s32.totalorder %s145, %s146
      %p158 = scmp.eq.s32.totalorder %s26, 1
      %p159 = por %p157, %p158
      %p161 = scmp.ne.s32.totalorder %s146, %s160
      %p162 = scmp.eq.s32.totalorder %s26, 0
      %p163 = por %p161, %p162
      %s165 = sadd.s32 %s164, 1
      %p168 = scmp.eq.s32.totalorder %s20, 1
      %p169 = scmp.ne.s32.totalorder %s164, %s166
      %p170 = scmp.eq.s32.totalorder %s20, 0
      %p171 = por %p169, %p170
      %p172 = scmp.ne.s32.totalorder %s164, %s166
      %p173 = scmp.eq.s32.totalorder %s25, 1
      %p174 = por %p172, %p173
      %p175 = scmp.ne.s32.totalorder %s166, %s167
      %p176 = scmp.eq.s32.totalorder %s25, 0
      %p177 = por %p175, %p176
      %p178 = scmp.ne.s32.totalorder %s166, %s167
      %p179 = scmp.eq.s32.totalorder %s26, 1
      %p180 = por %p178, %p179
      %p182 = scmp.ne.s32.totalorder %s167, %s181
      %p183 = scmp.eq.s32.totalorder %s26, 0
      %p184 = por %p182, %p183
      %s186 = sadd.s32 %s185, 1
      %p189 = scmp.eq.s32.totalorder %s20, 1
      %p190 = scmp.ne.s32.totalorder %s185, %s187
      %p191 = scmp.eq.s32.totalorder %s20, 0
      %p192 = por %p190, %p191
      %p193 = scmp.ne.s32.totalorder %s185, %s187
      %p194 = scmp.eq.s32.totalorder %s25, 1
      %p195 = por %p193, %p194
      %p196 = scmp.ne.s32.totalorder %s187, %s188
      %p197 = scmp.eq.s32.totalorder %s25, 0
      %p198 = por %p196, %p197
      %p199 = scmp.ne.s32.totalorder %s187, %s188
      %p200 = scmp.eq.s32.totalorder %s26, 1
      %p201 = por %p199, %p200
      %p203 = scmp.ne.s32.totalorder %s188, %s202
      %p204 = scmp.eq.s32.totalorder %s26, 0
      %p205 = por %p203, %p204
      %s206 = ssub.s32 %s20, %s27
      %p207 = scmp.eq.s32.totalorder %s206, 0
      %s209 = sadd.s32 %s208, 1
      %s210 = scalar_select %p207, %s208, %s209
      %p213 = pneg %p207
      %p214 = scmp.eq.s32.totalorder %s20, 1
      %p215 = por %p213, %p214
      %p216 = scmp.ne.s32.totalorder %s208, %s211
      %p217 = scmp.eq.s32.totalorder %s20, 0
      %p218 = por %p216, %p217
      %p219 = scmp.ne.s32.totalorder %s208, %s211
      %p220 = scmp.eq.s32.totalorder %s25, 1
      %p221 = por %p219, %p220
      %p222 = scmp.ne.s32.totalorder %s211, %s212
      %p223 = scmp.eq.s32.totalorder %s25, 0
      %p224 = por %p222, %p223
      %p225 = scmp.ne.s32.totalorder %s211, %s212
      %p226 = scmp.eq.s32.totalorder %s26, 1
      %p227 = por %p225, %p226
      %p229 = scmp.ne.s32.totalorder %s212, %s228
      %p230 = scmp.eq.s32.totalorder %s26, 0
      %p231 = por %p229, %p230
      %p232 = scmp.le.s32.totalorder 1, %s20
      %p233 = scmp.lt.s32.totalorder %s20, 3
      %p234 = pnand %p232, %p233
      %p235 = pneg %p234
      // Predicated region
      $region9: #{tpu_custom_call.1} parent=5 // pred_check
        _
      $region10: #{tpu_custom_call.1} parent=5 // pred_check_branch
        %237 = sbr.rel (%p234) target = $region12
      $region11: #{tpu_custom_call.1} parent=5 // pred_region
        %s238 = ssub.s32 %s20, 1
        // Predicated region
        $region13: #{tpu_custom_call.1} parent=11 // pred_check
          %p239 = pneg %p93
        $region14: #{tpu_custom_call.1} parent=11 // pred_check_branch
          %241 = sbr.rel (%p239) target = $region16
        $region15: #{tpu_custom_call.1} parent=11 // pred_region
          _
        $region16: #{tpu_custom_call.1} parent=11 // pred_fallthru
          _
        // Predicated region
        $region17: #{tpu_custom_call.1} parent=11 // pred_check
          %p242 = pneg %p114
        $region18: #{tpu_custom_call.1} parent=11 // pred_check_branch
          %244 = sbr.rel (%p242) target = $region20
        $region19: #{tpu_custom_call.1} parent=11 // pred_region
          _
        $region20: #{tpu_custom_call.1} parent=11 // pred_fallthru
          _
        // Predicated region
        $region21: #{tpu_custom_call.1} parent=11 // pred_check
          %p245 = pneg %p135
        $region22: #{tpu_custom_call.1} parent=11 // pred_check_branch
          %247 = sbr.rel (%p245) target = $region24
        $region23: #{tpu_custom_call.1} parent=11 // pred_region
          _
        $region24: #{tpu_custom_call.1} parent=11 // pred_fallthru
          _
        // Predicated region
        $region25: #{tpu_custom_call.1} parent=11 // pred_check
          %p248 = pneg %p156
        $region26: #{tpu_custom_call.1} parent=11 // pred_check_branch
          %250 = sbr.rel (%p248) target = $region28
        $region27: #{tpu_custom_call.1} parent=11 // pred_region
          _
        $region28: #{tpu_custom_call.1} parent=11 // pred_fallthru
          _
        // Predicated region
        $region29: #{tpu_custom_call.1} parent=11 // pred_check
          %p251 = pneg %p177
        $region30: #{tpu_custom_call.1} parent=11 // pred_check_branch
          %253 = sbr.rel (%p251) target = $region32
        $region31: #{tpu_custom_call.1} parent=11 // pred_region
          _
        $region32: #{tpu_custom_call.1} parent=11 // pred_fallthru
          _
        // Predicated region
        $region33: #{tpu_custom_call.1} parent=11 // pred_check
          %p254 = pneg %p198
        $region34: #{tpu_custom_call.1} parent=11 // pred_check_branch
          %256 = sbr.rel (%p254) target = $region36
        $region35: #{tpu_custom_call.1} parent=11 // pred_region
          _
        $region36: #{tpu_custom_call.1} parent=11 // pred_fallthru
          _
      $region12: #{tpu_custom_call.1} parent=5 // pred_fallthru
        _
      %p257 = scmp.lt.s32.totalorder %s20, 2
      // Predicated region
      $region37: #{tpu_custom_call.1} parent=5 // pred_check
        %p258 = pneg %p257
      $region38: #{tpu_custom_call.1} parent=5 // pred_check_branch
        %260 = sbr.rel (%p258) target = $region40
      $region39: #{tpu_custom_call.1} parent=5 // pred_region
        // Predicated region
        $region41: #{tpu_custom_call.1} parent=39 // pred_check
          %p261 = pneg %p40
        $region42: #{tpu_custom_call.1} parent=39 // pred_check_branch
          %263 = sbr.rel (%p261) target = $region44
        $region43: #{tpu_custom_call.1} parent=39 // pred_region
          %s264 = sand.u32 %s30, 1
          %s265 = scalar_lea.sflag [#allocation3], %s264
          %s266 = sand.u32 %s30, 1
          %s267 = smul.addr %s266, 8
          %s268 = scalar_lea.vmem [#allocation2], %s267
          %s270 = ssub.s32 128, 128
          %271 = vsyncadd %s265, %s270
          %s272 = smul.addr %s20, 128
          %s273 = scalar_lea.hbm %s0, %s272
          %s275 = sshll.u32 %s268, 4
          %s276 = int_to_ptr.vmem [resolvable:$true] %s275
          %278 = dma.hbm_to_vmem [thread:$0]  %s273, 128, %s276, %s265
        $region44: #{tpu_custom_call.1} parent=39 // pred_fallthru
          _
        // Predicated region
        $region45: #{tpu_custom_call.1} parent=39 // pred_check
          %p279 = pneg %p66
        $region46: #{tpu_custom_call.1} parent=39 // pred_check_branch
          %281 = sbr.rel (%p279) target = $region48
        $region47: #{tpu_custom_call.1} parent=39 // pred_region
          %p282 = scmp.lt.s32.totalorder %s20, 1
          %s283 = scalar_select %p282, %s20, 1
          %s284 = scalar_lea.vmem %s1, %s283
        $region48: #{tpu_custom_call.1} parent=39 // pred_fallthru
          _
      $region40: #{tpu_custom_call.1} parent=5 // pred_fallthru
        _
      %p285 = scmp.le.s32.totalorder 1, %s20
      %p286 = scmp.lt.s32.totalorder %s20, 3
      %p287 = pnand %p285, %p286
      %p288 = pneg %p287
      // Predicated region
      $region49: #{tpu_custom_call.1} parent=5 // pred_check
        _
      $region50: #{tpu_custom_call.1} parent=5 // pred_check_branch
        %290 = sbr.rel (%p287) target = $region52
      $region51: #{tpu_custom_call.1} parent=5 // pred_region
        %s291 = ssub.s32 %s20, 1
        %s292 = sand.u32 %s33, 1
        %s293 = scalar_lea.sflag [#allocation3], %s292
        %s294 = sand.u32 %s33, 1
        %s295 = smul.addr %s294, 8
        %s296 = scalar_lea.vmem [#allocation2], %s295
        // Predicated region
        $region53: #{tpu_custom_call.1} parent=51 // pred_check
          %p297 = pneg %p46
        $region54: #{tpu_custom_call.1} parent=51 // pred_check_branch
          %299 = sbr.rel (%p297) target = $region56
        $region55: #{tpu_custom_call.1} parent=51 // pred_region
          %300 = dma.done %s293, 128
        $region56: #{tpu_custom_call.1} parent=51 // pred_fallthru
          _
        %s301 = sand.u32 %s33, 1
        %s302 = scalar_lea.sflag [#allocation3], %s301
        %s303 = sand.u32 %s33, 1
        %s304 = smul.addr %s303, 8
        %s305 = scalar_lea.vmem [#allocation2], %s304
        %p306 = pneg %p46
        %p307 = pneg %p43
        %p308 = scmp.lt.s32.totalorder %s25, 1
        %s309 = scalar_select %p308, %s25, 1
        %s310 = scalar_lea.vmem %s1, %s309
        %p311 = pneg %p72
        %p312 = pneg %p69
        %p313 = pneg %p93
        %p314 = pneg %p90
        %p315 = pneg %p114
        %p316 = pneg %p111
        %p317 = pneg %p135
        %p318 = pneg %p132
        %p319 = pneg %p156
        %p320 = pneg %p153
        %p321 = pneg %p177
        %p322 = pneg %p174
        %p323 = pneg %p198
        %p324 = pneg %p195
        %p325 = pneg %p224
        %p326 = pneg %p221
        %s327 = sand.u32 %s211, 1
        %s328 = scalar_lea.sflag [#allocation4], %s327
        %s329 = sand.u32 %s211, 1
        %s330 = smul.addr %s329, 8
        %s331 = scalar_lea.vmem [#allocation5], %s330
        %p332 = scmp.lt.s32.totalorder %s25, 1
        %s333 = scalar_select %p332, %s25, 1
        %s334 = scalar_lea.vmem %s1, %s333
        %v335 = vld [vmem:[%s296] sm:$0xff]
        %v336 = vld [vmem:[%s2] sm:$0xff]
        %v337 = vld [vmem:[%s2 + $0x8] sm:$0xff]
        %v338 = vld [vmem:[%s2 + $0x10] sm:$0xff]
        %v339 = vld [vmem:[%s2 + $0x18] sm:$0xff]
        %vm340 = vcmask 261120
        %v342 = vsel %vm340, %v335, 0
        %344 = vmatprep.subr.mxu0 0.0
        %345 = vmatpush1.msra.mxu0 %v336
        %346 = vmatprep.subr.mxu0 0.0
        %347 = vmatpush1.msra.mxu0 %v337
        %348 = vmatprep.subr.mxu0 0.0
        %349 = vmatpush1.msra.mxu0 %v338
        %350 = vmatprep.subr.mxu0 0.0
        %351 = vmatpush1.msra.mxu0 %v339
        %352 = vmatprep.subr.mxu0 0.0
        %353 = vmatpush1.msra.mxu0 0.0
        %354 = vmatprep.subr.mxu0 0.0
        %355 = vmatpush1.msra.mxu0 0.0
        %356 = vmatprep.subr.mxu0 0.0
        %357 = vmatpush1.msra.mxu0 0.0
        %358 = vmatprep.subr.mxu0 0.0
        %359 = vmatpush1.msra.mxu0 0.0
        %360 = vmatprep.subr.mxu0 0.0
        %361 = vmatpush1.msra.mxu0 0.0
        %362 = vmatprep.subr.mxu0 0.0
        %363 = vmatpush1.msra.mxu0 0.0
        %364 = vmatprep.subr.mxu0 0.0
        %365 = vmatpush1.msra.mxu0 0.0
        %366 = vmatprep.subr.mxu0 0.0
        %367 = vmatpush1.msra.mxu0 0.0
        %368 = vmatprep.subr.mxu0 0.0
        %369 = vmatpush1.msra.mxu0 0.0
        %370 = vmatprep.subr.mxu0 0.0
        %371 = vmatpush1.msra.mxu0 0.0
        %372 = vmatprep.subr.mxu0 0.0
        %373 = vmatpush1.msra.mxu0 0.0
        %374 = vmatprep.subr.mxu0 0.0
        %375 = vmatpush1.msra.mxu0 0.0
        %376 = vmatprep.subr.mxu0 0.0
        %377 = vmatpush1.msra.mxu0 0.0
        %378 = vmatprep.subr.mxu0 0.0
        %379 = vmatpush1.msra.mxu0 0.0
        %380 = vmatprep.subr.mxu0 0.0
        %381 = vmatpush1.msra.mxu0 0.0
        %382 = vmatprep.subr.mxu0 0.0
        %383 = vmatpush1.msra.mxu0 0.0
        %384 = vmatprep.subr.mxu0 0.0
        %385 = vmatpush1.msra.mxu0 0.0
        %386 = vmatprep.subr.mxu0 0.0
        %387 = vmatpush1.msra.mxu0 0.0
        %388 = vmatprep.subr.mxu0 0.0
        %389 = vmatpush1.msra.mxu0 0.0
        %390 = vmatprep.subr.mxu0 0.0
        %391 = vmatpush1.msra.mxu0 0.0
        %392 = vmatprep.subr.mxu0 0.0
        %393 = vmatpush1.msra.mxu0 0.0
        %394 = vmatprep.subr.mxu0 0.0
        %395 = vmatpush1.msra.mxu0 0.0
        %396 = vmatprep.subr.mxu0 0.0
        %397 = vmatpush1.msra.mxu0 0.0
        %398 = vmatprep.subr.mxu0 0.0
        %399 = vmatpush1.msra.mxu0 0.0
        %400 = vmatprep.subr.mxu0 0.0
        %401 = vmatpush1.msra.mxu0 0.0
        %402 = vmatprep.subr.mxu0 0.0
        %403 = vmatpush1.msra.mxu0 0.0
        %404 = vmatprep.subr.mxu0 0.0
        %405 = vmatpush1.msra.mxu0 0.0
        %406 = vmatprep.subr.mxu0 0.0
        %407 = vmatpush1.msra.mxu0 0.0
        %408 = vmatprep.mubr.f32.mxu0 0.0
        %409 = vmatmul.mubr.f32.gmra.mrb[0].mxu0 %v342
        %v410 = vpop.f32.mrb[0].mxu0
        %v411 = vadd.f32 0.0, %v410
        %v412 = vpop.f32.mrb[0].mxu0
        %413 = vdwg.mxu0
        %v414 = vld [vmem:[%s3] sm:$0xff]
        %v415 = vld [vmem:[%s3 + $0x8] sm:$0xff]
        %v416 = vld [vmem:[%s3 + $0x10] sm:$0xff]
        %v417 = vld [vmem:[%s3 + $0x18] sm:$0xff]
        %v418 = vld [vmem:[%s334] sm:$0x1]
        %vm419 = vcmp.gt.f32.partialorder %v418, 0.5
        %421 = vrot.lane.b32.xlu0 %v411, 96
        %v422 = vpop.permute.xlu0 %421
        %vm423 = vcmask 64512
        %v424 = vsel %vm423, %v411, 0
        %v426 = vsel %vm423, %v422, 0
        %428 = vmatprep.subr.mxu0 0.0
        %429 = vmatpush1.xpose.msra.mxu0 %v426
        %430 = vmatprep.subr.mxu0 0.0
        %431 = vmatpush1.xpose.msra.mxu0 0.0
        %432 = vmatprep.subr.mxu0 0.0
        %433 = vmatpush1.xpose.msra.mxu0 0.0
        %434 = vmatprep.subr.mxu0 0.0
        %435 = vmatpush1.xpose.msra.mxu0 0.0
        %436 = vmatprep.subr.mxu0 0.0
        %437 = vmatpush1.xpose.msra.mxu0 0.0
        %438 = vmatprep.subr.mxu0 0.0
        %439 = vmatpush1.xpose.msra.mxu0 0.0
        %440 = vmatprep.subr.mxu0 0.0
        %441 = vmatpush1.xpose.msra.mxu0 0.0
        %442 = vmatprep.subr.mxu0 0.0
        %443 = vmatpush1.xpose.msra.mxu0 0.0
        %444 = vmatprep.subr.mxu0 0.0
        %445 = vmatpush1.xpose.msra.mxu0 0.0
        %446 = vmatprep.subr.mxu0 0.0
        %447 = vmatpush1.xpose.msra.mxu0 0.0
        %448 = vmatprep.subr.mxu0 0.0
        %449 = vmatpush1.xpose.msra.mxu0 0.0
        %450 = vmatprep.subr.mxu0 0.0
        %451 = vmatpush1.xpose.msra.mxu0 0.0
        %452 = vmatprep.subr.mxu0 0.0
        %453 = vmatpush1.xpose.msra.mxu0 0.0
        %454 = vmatprep.subr.mxu0 0.0
        %455 = vmatpush1.xpose.msra.mxu0 0.0
        %456 = vmatprep.subr.mxu0 0.0
        %457 = vmatpush1.xpose.msra.mxu0 0.0
        %458 = vmatprep.subr.mxu0 0.0
        %459 = vmatpush1.xpose.msra.mxu0 0.0
        %460 = vmatprep.subr.mxu0 0.0
        %461 = vmatpush1.xpose.msra.mxu0 0.0
        %462 = vmatprep.subr.mxu0 0.0
        %463 = vmatpush1.xpose.msra.mxu0 0.0
        %464 = vmatprep.subr.mxu0 0.0
        %465 = vmatpush1.xpose.msra.mxu0 0.0
        %466 = vmatprep.subr.mxu0 0.0
        %467 = vmatpush1.xpose.msra.mxu0 0.0
        %468 = vmatprep.subr.mxu0 0.0
        %469 = vmatpush1.xpose.msra.mxu0 0.0
        %470 = vmatprep.subr.mxu0 0.0
        %471 = vmatpush1.xpose.msra.mxu0 0.0
        %472 = vmatprep.subr.mxu0 0.0
        %473 = vmatpush1.xpose.msra.mxu0 0.0
        %474 = vmatprep.subr.mxu0 0.0
        %475 = vmatpush1.xpose.msra.mxu0 0.0
        %476 = vmatprep.subr.mxu0 0.0
        %477 = vmatpush1.xpose.msra.mxu0 0.0
        %478 = vmatprep.subr.mxu0 0.0
        %479 = vmatpush1.xpose.msra.mxu0 0.0
        %480 = vmatprep.subr.mxu0 0.0
        %481 = vmatpush1.xpose.msra.mxu0 0.0
        %482 = vmatprep.subr.mxu0 0.0
        %483 = vmatpush1.xpose.msra.mxu0 0.0
        %484 = vmatprep.subr.mxu0 0.0
        %485 = vmatpush1.xpose.msra.mxu0 0.0
        %486 = vmatprep.subr.mxu0 0.0
        %487 = vmatpush1.xpose.msra.mxu0 0.0
        %488 = vmatprep.subr.mxu0 0.0
        %489 = vmatpush1.xpose.msra.mxu0 0.0
        %490 = vmatprep.subr.mxu0 0.0
        %491 = vmatpush1.xpose.msra.mxu0 0.0
        %492 = vmatprep.mubr.f32.mxu0 0.0
        %493 = vmatmul.mubr.f32.gmra.mrb[0].mxu0 %v424
        %v494 = vpop.f32.mrb[0].mxu0
        %v495 = vadd.f32 0.0, %v494
        %v496 = vpop.f32.mrb[0].mxu0
        %497 = vdwg.mxu0
        %v498 = vsel %vm419, 1, 0
        %v499 = vlaneseq
        %v500 = vshrl.u32 %v499, 7
        %v501 = vsub.s32 0, %v500
        %v502 = vrot.slane %v498, %v501
        %vm503 = vcmp.eq.s32.totalorder %v502, 1
        %v504 = vsel %vm503, -1e+09, %v495
        %v505 = vsel %vm423, %v504, -inf
        %506 = vmax.xlane.f32.xlu0 %v505
        %v507 = vpop.xlane.xlu0 %506
        %v508 = vsub.f32 %v504, %v507
        %v509 = vmul.f32 %v508, 1.442695
        %v510 = vpow.pop %v509
        %v511 = vsel %vm423, %v510, 0.0
        %512 = vadd.xlane.f32.xlu0 %v511
        %v513 = vpop.xlane.xlu0 %512
        %v514 = vrcp.pop %v513
        %v515 = vmul.f32 %v510, %v514
        %516 = vrot.lane.b32.xlu0 %v411, 64
        %v517 = vpop.permute.xlu0 %516
        %v520 = vsel %vm423, %v515, 0
        %522 = vmatprep.subr.mxu0 0.0
        %523 = vmatpush1.msra.mxu0 %v517
        %524 = vmatprep.subr.mxu0 0.0
        %525 = vmatpush1.msra.mxu0 0.0
        %526 = vmatprep.subr.mxu0 0.0
        %527 = vmatpush1.msra.mxu0 0.0
        %528 = vmatprep.subr.mxu0 0.0
        %529 = vmatpush1.msra.mxu0 0.0
        %530 = vmatprep.subr.mxu0 0.0
        %531 = vmatpush1.msra.mxu0 0.0
        %532 = vmatprep.subr.mxu0 0.0
        %533 = vmatpush1.msra.mxu0 0.0
        %534 = vmatprep.subr.mxu0 0.0
        %535 = vmatpush1.msra.mxu0 0.0
        %536 = vmatprep.subr.mxu0 0.0
        %537 = vmatpush1.msra.mxu0 0.0
        %538 = vmatprep.subr.mxu0 0.0
        %539 = vmatpush1.msra.mxu0 0.0
        %540 = vmatprep.subr.mxu0 0.0
        %541 = vmatpush1.msra.mxu0 0.0
        %542 = vmatprep.subr.mxu0 0.0
        %543 = vmatpush1.msra.mxu0 0.0
        %544 = vmatprep.subr.mxu0 0.0
        %545 = vmatpush1.msra.mxu0 0.0
        %546 = vmatprep.subr.mxu0 0.0
        %547 = vmatpush1.msra.mxu0 0.0
        %548 = vmatprep.subr.mxu0 0.0
        %549 = vmatpush1.msra.mxu0 0.0
        %550 = vmatprep.subr.mxu0 0.0
        %551 = vmatpush1.msra.mxu0 0.0
        %552 = vmatprep.subr.mxu0 0.0
        %553 = vmatpush1.msra.mxu0 0.0
        %554 = vmatprep.subr.mxu0 0.0
        %555 = vmatpush1.msra.mxu0 0.0
        %556 = vmatprep.subr.mxu0 0.0
        %557 = vmatpush1.msra.mxu0 0.0
        %558 = vmatprep.subr.mxu0 0.0
        %559 = vmatpush1.msra.mxu0 0.0
        %560 = vmatprep.subr.mxu0 0.0
        %561 = vmatpush1.msra.mxu0 0.0
        %562 = vmatprep.subr.mxu0 0.0
        %563 = vmatpush1.msra.mxu0 0.0
        %564 = vmatprep.subr.mxu0 0.0
        %565 = vmatpush1.msra.mxu0 0.0
        %566 = vmatprep.subr.mxu0 0.0
        %567 = vmatpush1.msra.mxu0 0.0
        %568 = vmatprep.subr.mxu0 0.0
        %569 = vmatpush1.msra.mxu0 0.0
        %570 = vmatprep.subr.mxu0 0.0
        %571 = vmatpush1.msra.mxu0 0.0
        %572 = vmatprep.subr.mxu0 0.0
        %573 = vmatpush1.msra.mxu0 0.0
        %574 = vmatprep.subr.mxu0 0.0
        %575 = vmatpush1.msra.mxu0 0.0
        %576 = vmatprep.subr.mxu0 0.0
        %577 = vmatpush1.msra.mxu0 0.0
        %578 = vmatprep.subr.mxu0 0.0
        %579 = vmatpush1.msra.mxu0 0.0
        %580 = vmatprep.subr.mxu0 0.0
        %581 = vmatpush1.msra.mxu0 0.0
        %582 = vmatprep.subr.mxu0 0.0
        %583 = vmatpush1.msra.mxu0 0.0
        %584 = vmatprep.subr.mxu0 0.0
        %585 = vmatpush1.msra.mxu0 0.0
        %586 = vmatprep.mubr.f32.mxu0 0.0
        %587 = vmatmul.mubr.f32.gmra.mrb[0].mxu0 %v520
        %v588 = vpop.f32.mrb[0].mxu0
        %v589 = vadd.f32 0.0, %v588
        %v590 = vpop.f32.mrb[0].mxu0
        %591 = vdwg.mxu0
        %592 = vrot.lane.b32.xlu0 %v411, 120
        %v593 = vpop.permute.xlu0 %592
        %594 = vrot.lane.b32.xlu0 %v411, 88
        %v595 = vpop.permute.xlu0 %594
        %v596 = vsel %vm423, %v593, 0
        %v598 = vsel %vm423, %v595, 0
        %600 = vmatprep.subr.mxu0 0.0
        %601 = vmatpush1.xpose.msra.mxu0 %v598
        %602 = vmatprep.subr.mxu0 0.0
        %603 = vmatpush1.xpose.msra.mxu0 0.0
        %604 = vmatprep.subr.mxu0 0.0
        %605 = vmatpush1.xpose.msra.mxu0 0.0
        %606 = vmatprep.subr.mxu0 0.0
        %607 = vmatpush1.xpose.msra.mxu0 0.0
        %608 = vmatprep.subr.mxu0 0.0
        %609 = vmatpush1.xpose.msra.mxu0 0.0
        %610 = vmatprep.subr.mxu0 0.0
        %611 = vmatpush1.xpose.msra.mxu0 0.0
        %612 = vmatprep.subr.mxu0 0.0
        %613 = vmatpush1.xpose.msra.mxu0 0.0
        %614 = vmatprep.subr.mxu0 0.0
        %615 = vmatpush1.xpose.msra.mxu0 0.0
        %616 = vmatprep.subr.mxu0 0.0
        %617 = vmatpush1.xpose.msra.mxu0 0.0
        %618 = vmatprep.subr.mxu0 0.0
        %619 = vmatpush1.xpose.msra.mxu0 0.0
        %620 = vmatprep.subr.mxu0 0.0
        %621 = vmatpush1.xpose.msra.mxu0 0.0
        %622 = vmatprep.subr.mxu0 0.0
        %623 = vmatpush1.xpose.msra.mxu0 0.0
        %624 = vmatprep.subr.mxu0 0.0
        %625 = vmatpush1.xpose.msra.mxu0 0.0
        %626 = vmatprep.subr.mxu0 0.0
        %627 = vmatpush1.xpose.msra.mxu0 0.0
        %628 = vmatprep.subr.mxu0 0.0
        %629 = vmatpush1.xpose.msra.mxu0 0.0
        %630 = vmatprep.subr.mxu0 0.0
        %631 = vmatpush1.xpose.msra.mxu0 0.0
        %632 = vmatprep.subr.mxu0 0.0
        %633 = vmatpush1.xpose.msra.mxu0 0.0
        %634 = vmatprep.subr.mxu0 0.0
        %635 = vmatpush1.xpose.msra.mxu0 0.0
        %636 = vmatprep.subr.mxu0 0.0
        %637 = vmatpush1.xpose.msra.mxu0 0.0
        %638 = vmatprep.subr.mxu0 0.0
        %639 = vmatpush1.xpose.msra.mxu0 0.0
        %640 = vmatprep.subr.mxu0 0.0
        %641 = vmatpush1.xpose.msra.mxu0 0.0
        %642 = vmatprep.subr.mxu0 0.0
        %643 = vmatpush1.xpose.msra.mxu0 0.0
        %644 = vmatprep.subr.mxu0 0.0
        %645 = vmatpush1.xpose.msra.mxu0 0.0
        %646 = vmatprep.subr.mxu0 0.0
        %647 = vmatpush1.xpose.msra.mxu0 0.0
        %648 = vmatprep.subr.mxu0 0.0
        %649 = vmatpush1.xpose.msra.mxu0 0.0
        %650 = vmatprep.subr.mxu0 0.0
        %651 = vmatpush1.xpose.msra.mxu0 0.0
        %652 = vmatprep.subr.mxu0 0.0
        %653 = vmatpush1.xpose.msra.mxu0 0.0
        %654 = vmatprep.subr.mxu0 0.0
        %655 = vmatpush1.xpose.msra.mxu0 0.0
        %656 = vmatprep.subr.mxu0 0.0
        %657 = vmatpush1.xpose.msra.mxu0 0.0
        %658 = vmatprep.subr.mxu0 0.0
        %659 = vmatpush1.xpose.msra.mxu0 0.0
        %660 = vmatprep.subr.mxu0 0.0
        %661 = vmatpush1.xpose.msra.mxu0 0.0
        %662 = vmatprep.subr.mxu0 0.0
        %663 = vmatpush1.xpose.msra.mxu0 0.0
        %664 = vmatprep.mubr.f32.mxu0 0.0
        %665 = vmatmul.mubr.f32.gmra.mrb[0].mxu0 %v596
        %v666 = vpop.f32.mrb[0].mxu0
        %v667 = vadd.f32 0.0, %v666
        %v668 = vpop.f32.mrb[0].mxu0
        %669 = vdwg.mxu0
        %v670 = vsel %vm503, -1e+09, %v667
        %v671 = vsel %vm423, %v670, -inf
        %672 = vmax.xlane.f32.xlu0 %v671
        %v673 = vpop.xlane.xlu0 %672
        %v674 = vsub.f32 %v670, %v673
        %v675 = vmul.f32 %v674, 1.442695
        %v676 = vpow.pop %v675
        %v677 = vsel %vm423, %v676, 0.0
        %678 = vadd.xlane.f32.xlu0 %v677
        %v679 = vpop.xlane.xlu0 %678
        %v680 = vrcp.pop %v679
        %v681 = vmul.f32 %v676, %v680
        %682 = vrot.lane.b32.xlu0 %v411, 56
        %v683 = vpop.permute.xlu0 %682
        %v686 = vsel %vm423, %v681, 0
        %688 = vmatprep.subr.mxu0 0.0
        %689 = vmatpush1.msra.mxu0 %v683
        %690 = vmatprep.subr.mxu0 0.0
        %691 = vmatpush1.msra.mxu0 0.0
        %692 = vmatprep.subr.mxu0 0.0
        %693 = vmatpush1.msra.mxu0 0.0
        %694 = vmatprep.subr.mxu0 0.0
        %695 = vmatpush1.msra.mxu0 0.0
        %696 = vmatprep.subr.mxu0 0.0
        %697 = vmatpush1.msra.mxu0 0.0
        %698 = vmatprep.subr.mxu0 0.0
        %699 = vmatpush1.msra.mxu0 0.0
        %700 = vmatprep.subr.mxu0 0.0
        %701 = vmatpush1.msra.mxu0 0.0
        %702 = vmatprep.subr.mxu0 0.0
        %703 = vmatpush1.msra.mxu0 0.0
        %704 = vmatprep.subr.mxu0 0.0
        %705 = vmatpush1.msra.mxu0 0.0
        %706 = vmatprep.subr.mxu0 0.0
        %707 = vmatpush1.msra.mxu0 0.0
        %708 = vmatprep.subr.mxu0 0.0
        %709 = vmatpush1.msra.mxu0 0.0
        %710 = vmatprep.subr.mxu0 0.0
        %711 = vmatpush1.msra.mxu0 0.0
        %712 = vmatprep.subr.mxu0 0.0
        %713 = vmatpush1.msra.mxu0 0.0
        %714 = vmatprep.subr.mxu0 0.0
        %715 = vmatpush1.msra.mxu0 0.0
        %716 = vmatprep.subr.mxu0 0.0
        %717 = vmatpush1.msra.mxu0 0.0
        %718 = vmatprep.subr.mxu0 0.0
        %719 = vmatpush1.msra.mxu0 0.0
        %720 = vmatprep.subr.mxu0 0.0
        %721 = vmatpush1.msra.mxu0 0.0
        %722 = vmatprep.subr.mxu0 0.0
        %723 = vmatpush1.msra.mxu0 0.0
        %724 = vmatprep.subr.mxu0 0.0
        %725 = vmatpush1.msra.mxu0 0.0
        %726 = vmatprep.subr.mxu0 0.0
        %727 = vmatpush1.msra.mxu0 0.0
        %728 = vmatprep.subr.mxu0 0.0
        %729 = vmatpush1.msra.mxu0 0.0
        %730 = vmatprep.subr.mxu0 0.0
        %731 = vmatpush1.msra.mxu0 0.0
        %732 = vmatprep.subr.mxu0 0.0
        %733 = vmatpush1.msra.mxu0 0.0
        %734 = vmatprep.subr.mxu0 0.0
        %735 = vmatpush1.msra.mxu0 0.0
        %736 = vmatprep.subr.mxu0 0.0
        %737 = vmatpush1.msra.mxu0 0.0
        %738 = vmatprep.subr.mxu0 0.0
        %739 = vmatpush1.msra.mxu0 0.0
        %740 = vmatprep.subr.mxu0 0.0
        %741 = vmatpush1.msra.mxu0 0.0
        %742 = vmatprep.subr.mxu0 0.0
        %743 = vmatpush1.msra.mxu0 0.0
        %744 = vmatprep.subr.mxu0 0.0
        %745 = vmatpush1.msra.mxu0 0.0
        %746 = vmatprep.subr.mxu0 0.0
        %747 = vmatpush1.msra.mxu0 0.0
        %748 = vmatprep.subr.mxu0 0.0
        %749 = vmatpush1.msra.mxu0 0.0
        %750 = vmatprep.subr.mxu0 0.0
        %751 = vmatpush1.msra.mxu0 0.0
        %752 = vmatprep.mubr.f32.mxu0 0.0
        %753 = vmatmul.mubr.f32.gmra.mrb[0].mxu0 %v686
        %v754 = vpop.f32.mrb[0].mxu0
        %v755 = vadd.f32 0.0, %v754
        %v756 = vpop.f32.mrb[0].mxu0
        %757 = vdwg.mxu0
        %v759 = vsel %vm423, %v755, 0
        %761 = vmatprep.subr.mxu0 0.0
        %762 = vmatpush1.msra.mxu0 %v415
        %763 = vmatprep.subr.mxu0 0.0
        %764 = vmatpush1.msra.mxu0 0.0
        %765 = vmatprep.subr.mxu0 0.0
        %766 = vmatpush1.msra.mxu0 0.0
        %767 = vmatprep.subr.mxu0 0.0
        %768 = vmatpush1.msra.mxu0 0.0
        %769 = vmatprep.subr.mxu0 0.0
        %770 = vmatpush1.msra.mxu0 0.0
        %771 = vmatprep.subr.mxu0 0.0
        %772 = vmatpush1.msra.mxu0 0.0
        %773 = vmatprep.subr.mxu0 0.0
        %774 = vmatpush1.msra.mxu0 0.0
        %775 = vmatprep.subr.mxu0 0.0
        %776 = vmatpush1.msra.mxu0 0.0
        %777 = vmatprep.subr.mxu0 0.0
        %778 = vmatpush1.msra.mxu0 0.0
        %779 = vmatprep.subr.mxu0 0.0
        %780 = vmatpush1.msra.mxu0 0.0
        %781 = vmatprep.subr.mxu0 0.0
        %782 = vmatpush1.msra.mxu0 0.0
        %783 = vmatprep.subr.mxu0 0.0
        %784 = vmatpush1.msra.mxu0 0.0
        %785 = vmatprep.subr.mxu0 0.0
        %786 = vmatpush1.msra.mxu0 0.0
        %787 = vmatprep.subr.mxu0 0.0
        %788 = vmatpush1.msra.mxu0 0.0
        %789 = vmatprep.subr.mxu0 0.0
        %790 = vmatpush1.msra.mxu0 0.0
        %791 = vmatprep.subr.mxu0 0.0
        %792 = vmatpush1.msra.mxu0 0.0
        %793 = vmatprep.subr.mxu0 0.0
        %794 = vmatpush1.msra.mxu0 0.0
        %795 = vmatprep.subr.mxu0 0.0
        %796 = vmatpush1.msra.mxu0 0.0
        %797 = vmatprep.subr.mxu0 0.0
        %798 = vmatpush1.msra.mxu0 0.0
        %799 = vmatprep.subr.mxu0 0.0
        %800 = vmatpush1.msra.mxu0 0.0
        %801 = vmatprep.subr.mxu0 0.0
        %802 = vmatpush1.msra.mxu0 0.0
        %803 = vmatprep.subr.mxu0 0.0
        %804 = vmatpush1.msra.mxu0 0.0
        %805 = vmatprep.subr.mxu0 0.0
        %806 = vmatpush1.msra.mxu0 0.0
        %807 = vmatprep.subr.mxu0 0.0
        %808 = vmatpush1.msra.mxu0 0.0
        %809 = vmatprep.subr.mxu0 0.0
        %810 = vmatpush1.msra.mxu0 0.0
        %811 = vmatprep.subr.mxu0 0.0
        %812 = vmatpush1.msra.mxu0 0.0
        %813 = vmatprep.subr.mxu0 0.0
        %814 = vmatpush1.msra.mxu0 0.0
        %815 = vmatprep.subr.mxu0 0.0
        %816 = vmatpush1.msra.mxu0 0.0
        %817 = vmatprep.subr.mxu0 0.0
        %818 = vmatpush1.msra.mxu0 0.0
        %819 = vmatprep.subr.mxu0 0.0
        %820 = vmatpush1.msra.mxu0 0.0
        %821 = vmatprep.subr.mxu0 0.0
        %822 = vmatpush1.msra.mxu0 0.0
        %823 = vmatprep.subr.mxu0 0.0
        %824 = vmatpush1.msra.mxu0 0.0
        %825 = vmatprep.mubr.f32.mxu0 0.0
        %826 = vmatmul.mubr.f32.gmra.mrb[0].mxu0 %v759
        %v827 = vpop.f32.mrb[0].mxu0
        %v828 = vadd.f32 0.0, %v827
        %v829 = vpop.f32.mrb[0].mxu0
        %830 = vdwg.mxu0
        %v832 = vsel %vm423, %v589, 0
        %834 = vmatprep.subr.mxu0 0.0
        %835 = vmatpush1.msra.mxu0 %v414
        %836 = vmatprep.subr.mxu0 0.0
        %837 = vmatpush1.msra.mxu0 0.0
        %838 = vmatprep.subr.mxu0 0.0
        %839 = vmatpush1.msra.mxu0 0.0
        %840 = vmatprep.subr.mxu0 0.0
        %841 = vmatpush1.msra.mxu0 0.0
        %842 = vmatprep.subr.mxu0 0.0
        %843 = vmatpush1.msra.mxu0 0.0
        %844 = vmatprep.subr.mxu0 0.0
        %845 = vmatpush1.msra.mxu0 0.0
        %846 = vmatprep.subr.mxu0 0.0
        %847 = vmatpush1.msra.mxu0 0.0
        %848 = vmatprep.subr.mxu0 0.0
        %849 = vmatpush1.msra.mxu0 0.0
        %850 = vmatprep.subr.mxu0 0.0
        %851 = vmatpush1.msra.mxu0 0.0
        %852 = vmatprep.subr.mxu0 0.0
        %853 = vmatpush1.msra.mxu0 0.0
        %854 = vmatprep.subr.mxu0 0.0
        %855 = vmatpush1.msra.mxu0 0.0
        %856 = vmatprep.subr.mxu0 0.0
        %857 = vmatpush1.msra.mxu0 0.0
        %858 = vmatprep.subr.mxu0 0.0
        %859 = vmatpush1.msra.mxu0 0.0
        %860 = vmatprep.subr.mxu0 0.0
        %861 = vmatpush1.msra.mxu0 0.0
        %862 = vmatprep.subr.mxu0 0.0
        %863 = vmatpush1.msra.mxu0 0.0
        %864 = vmatprep.subr.mxu0 0.0
        %865 = vmatpush1.msra.mxu0 0.0
        %866 = vmatprep.subr.mxu0 0.0
        %867 = vmatpush1.msra.mxu0 0.0
        %868 = vmatprep.subr.mxu0 0.0
        %869 = vmatpush1.msra.mxu0 0.0
        %870 = vmatprep.subr.mxu0 0.0
        %871 = vmatpush1.msra.mxu0 0.0
        %872 = vmatprep.subr.mxu0 0.0
        %873 = vmatpush1.msra.mxu0 0.0
        %874 = vmatprep.subr.mxu0 0.0
        %875 = vmatpush1.msra.mxu0 0.0
        %876 = vmatprep.subr.mxu0 0.0
        %877 = vmatpush1.msra.mxu0 0.0
        %878 = vmatprep.subr.mxu0 0.0
        %879 = vmatpush1.msra.mxu0 0.0
        %880 = vmatprep.subr.mxu0 0.0
        %881 = vmatpush1.msra.mxu0 0.0
        %882 = vmatprep.subr.mxu0 0.0
        %883 = vmatpush1.msra.mxu0 0.0
        %884 = vmatprep.subr.mxu0 0.0
        %885 = vmatpush1.msra.mxu0 0.0
        %886 = vmatprep.subr.mxu0 0.0
        %887 = vmatpush1.msra.mxu0 0.0
        %888 = vmatprep.subr.mxu0 0.0
        %889 = vmatpush1.msra.mxu0 0.0
        %890 = vmatprep.subr.mxu0 0.0
        %891 = vmatpush1.msra.mxu0 0.0
        %892 = vmatprep.subr.mxu0 0.0
        %893 = vmatpush1.msra.mxu0 0.0
        %894 = vmatprep.subr.mxu0 0.0
        %895 = vmatpush1.msra.mxu0 0.0
        %896 = vmatprep.subr.mxu0 0.0
        %897 = vmatpush1.msra.mxu0 0.0
        %898 = vmatprep.mubr.f32.mxu0 0.0
        %899 = vmatmul.mubr.f32.gmra.mrb[0].mxu0 %v832
        %v900 = vpop.f32.mrb[0].mxu0
        %v901 = vadd.f32 %v828, %v900
        %v902 = vpop.f32.mrb[0].mxu0
        %903 = vdwg.mxu0
        %904 = vrot.lane.b32.xlu0 %v411, 112
        %v905 = vpop.permute.xlu0 %904
        %906 = vrot.lane.b32.xlu0 %v411, 80
        %v907 = vpop.permute.xlu0 %906
        %v908 = vsel %vm423, %v905, 0
        %v910 = vsel %vm423, %v907, 0
        %912 = vmatprep.subr.mxu0 0.0
        %913 = vmatpush1.xpose.msra.mxu0 %v910
        %914 = vmatprep.subr.mxu0 0.0
        %915 = vmatpush1.xpose.msra.mxu0 0.0
        %916 = vmatprep.subr.mxu0 0.0
        %917 = vmatpush1.xpose.msra.mxu0 0.0
        %918 = vmatprep.subr.mxu0 0.0
        %919 = vmatpush1.xpose.msra.mxu0 0.0
        %920 = vmatprep.subr.mxu0 0.0
        %921 = vmatpush1.xpose.msra.mxu0 0.0
        %922 = vmatprep.subr.mxu0 0.0
        %923 = vmatpush1.xpose.msra.mxu0 0.0
        %924 = vmatprep.subr.mxu0 0.0
        %925 = vmatpush1.xpose.msra.mxu0 0.0
        %926 = vmatprep.subr.mxu0 0.0
        %927 = vmatpush1.xpose.msra.mxu0 0.0
        %928 = vmatprep.subr.mxu0 0.0
        %929 = vmatpush1.xpose.msra.mxu0 0.0
        %930 = vmatprep.subr.mxu0 0.0
        %931 = vmatpush1.xpose.msra.mxu0 0.0
        %932 = vmatprep.subr.mxu0 0.0
        %933 = vmatpush1.xpose.msra.mxu0 0.0
        %934 = vmatprep.subr.mxu0 0.0
        %935 = vmatpush1.xpose.msra.mxu0 0.0
        %936 = vmatprep.subr.mxu0 0.0
        %937 = vmatpush1.xpose.msra.mxu0 0.0
        %938 = vmatprep.subr.mxu0 0.0
        %939 = vmatpush1.xpose.msra.mxu0 0.0
        %940 = vmatprep.subr.mxu0 0.0
        %941 = vmatpush1.xpose.msra.mxu0 0.0
        %942 = vmatprep.subr.mxu0 0.0
        %943 = vmatpush1.xpose.msra.mxu0 0.0
        %944 = vmatprep.subr.mxu0 0.0
        %945 = vmatpush1.xpose.msra.mxu0 0.0
        %946 = vmatprep.subr.mxu0 0.0
        %947 = vmatpush1.xpose.msra.mxu0 0.0
        %948 = vmatprep.subr.mxu0 0.0
        %949 = vmatpush1.xpose.msra.mxu0 0.0
        %950 = vmatprep.subr.mxu0 0.0
        %951 = vmatpush1.xpose.msra.mxu0 0.0
        %952 = vmatprep.subr.mxu0 0.0
        %953 = vmatpush1.xpose.msra.mxu0 0.0
        %954 = vmatprep.subr.mxu0 0.0
        %955 = vmatpush1.xpose.msra.mxu0 0.0
        %956 = vmatprep.subr.mxu0 0.0
        %957 = vmatpush1.xpose.msra.mxu0 0.0
        %958 = vmatprep.subr.mxu0 0.0
        %959 = vmatpush1.xpose.msra.mxu0 0.0
        %960 = vmatprep.subr.mxu0 0.0
        %961 = vmatpush1.xpose.msra.mxu0 0.0
        %962 = vmatprep.subr.mxu0 0.0
        %963 = vmatpush1.xpose.msra.mxu0 0.0
        %964 = vmatprep.subr.mxu0 0.0
        %965 = vmatpush1.xpose.msra.mxu0 0.0
        %966 = vmatprep.subr.mxu0 0.0
        %967 = vmatpush1.xpose.msra.mxu0 0.0
        %968 = vmatprep.subr.mxu0 0.0
        %969 = vmatpush1.xpose.msra.mxu0 0.0
        %970 = vmatprep.subr.mxu0 0.0
        %971 = vmatpush1.xpose.msra.mxu0 0.0
        %972 = vmatprep.subr.mxu0 0.0
        %973 = vmatpush1.xpose.msra.mxu0 0.0
        %974 = vmatprep.subr.mxu0 0.0
        %975 = vmatpush1.xpose.msra.mxu0 0.0
        %976 = vmatprep.mubr.f32.mxu0 0.0
        %977 = vmatmul.mubr.f32.gmra.mrb[0].mxu0 %v908
        %v978 = vpop.f32.mrb[0].mxu0
        %v979 = vadd.f32 0.0, %v978
        %v980 = vpop.f32.mrb[0].mxu0
        %981 = vdwg.mxu0
        %v982 = vsel %vm503, -1e+09, %v979
        %v983 = vsel %vm423, %v982, -inf
        %984 = vmax.xlane.f32.xlu0 %v983
        %v985 = vpop.xlane.xlu0 %984
        %v986 = vsub.f32 %v982, %v985
        %v987 = vmul.f32 %v986, 1.442695
        %v988 = vpow.pop %v987
        %v989 = vsel %vm423, %v988, 0.0
        %990 = vadd.xlane.f32.xlu0 %v989
        %v991 = vpop.xlane.xlu0 %990
        %v992 = vrcp.pop %v991
        %v993 = vmul.f32 %v988, %v992
        %994 = vrot.lane.b32.xlu0 %v411, 48
        %v995 = vpop.permute.xlu0 %994
        %v998 = vsel %vm423, %v993, 0
        %1000 = vmatprep.subr.mxu0 0.0
        %1001 = vmatpush1.msra.mxu0 %v995
        %1002 = vmatprep.subr.mxu0 0.0
        %1003 = vmatpush1.msra.mxu0 0.0
        %1004 = vmatprep.subr.mxu0 0.0
        %1005 = vmatpush1.msra.mxu0 0.0
        %1006 = vmatprep.subr.mxu0 0.0
        %1007 = vmatpush1.msra.mxu0 0.0
        %1008 = vmatprep.subr.mxu0 0.0
        %1009 = vmatpush1.msra.mxu0 0.0
        %1010 = vmatprep.subr.mxu0 0.0
        %1011 = vmatpush1.msra.mxu0 0.0
        %1012 = vmatprep.subr.mxu0 0.0
        %1013 = vmatpush1.msra.mxu0 0.0
        %1014 = vmatprep.subr.mxu0 0.0
        %1015 = vmatpush1.msra.mxu0 0.0
        %1016 = vmatprep.subr.mxu0 0.0
        %1017 = vmatpush1.msra.mxu0 0.0
        %1018 = vmatprep.subr.mxu0 0.0
        %1019 = vmatpush1.msra.mxu0 0.0
        %1020 = vmatprep.subr.mxu0 0.0
        %1021 = vmatpush1.msra.mxu0 0.0
        %1022 = vmatprep.subr.mxu0 0.0
        %1023 = vmatpush1.msra.mxu0 0.0
        %1024 = vmatprep.subr.mxu0 0.0
        %1025 = vmatpush1.msra.mxu0 0.0
        %1026 = vmatprep.subr.mxu0 0.0
        %1027 = vmatpush1.msra.mxu0 0.0
        %1028 = vmatprep.subr.mxu0 0.0
        %1029 = vmatpush1.msra.mxu0 0.0
        %1030 = vmatprep.subr.mxu0 0.0
        %1031 = vmatpush1.msra.mxu0 0.0
        %1032 = vmatprep.subr.mxu0 0.0
        %1033 = vmatpush1.msra.mxu0 0.0
        %1034 = vmatprep.subr.mxu0 0.0
        %1035 = vmatpush1.msra.mxu0 0.0
        %1036 = vmatprep.subr.mxu0 0.0
        %1037 = vmatpush1.msra.mxu0 0.0
        %1038 = vmatprep.subr.mxu0 0.0
        %1039 = vmatpush1.msra.mxu0 0.0
        %1040 = vmatprep.subr.mxu0 0.0
        %1041 = vmatpush1.msra.mxu0 0.0
        %1042 = vmatprep.subr.mxu0 0.0
        %1043 = vmatpush1.msra.mxu0 0.0
        %1044 = vmatprep.subr.mxu0 0.0
        %1045 = vmatpush1.msra.mxu0 0.0
        %1046 = vmatprep.subr.mxu0 0.0
        %1047 = vmatpush1.msra.mxu0 0.0
        %1048 = vmatprep.subr.mxu0 0.0
        %1049 = vmatpush1.msra.mxu0 0.0
        %1050 = vmatprep.subr.mxu0 0.0
        %1051 = vmatpush1.msra.mxu0 0.0
        %1052 = vmatprep.subr.mxu0 0.0
        %1053 = vmatpush1.msra.mxu0 0.0
        %1054 = vmatprep.subr.mxu0 0.0
        %1055 = vmatpush1.msra.mxu0 0.0
        %1056 = vmatprep.subr.mxu0 0.0
        %1057 = vmatpush1.msra.mxu0 0.0
        %1058 = vmatprep.subr.mxu0 0.0
        %1059 = vmatpush1.msra.mxu0 0.0
        %1060 = vmatprep.subr.mxu0 0.0
        %1061 = vmatpush1.msra.mxu0 0.0
        %1062 = vmatprep.subr.mxu0 0.0
        %1063 = vmatpush1.msra.mxu0 0.0
        %1064 = vmatprep.mubr.f32.mxu0 0.0
        %1065 = vmatmul.mubr.f32.gmra.mrb[0].mxu0 %v998
        %v1066 = vpop.f32.mrb[0].mxu0
        %v1067 = vadd.f32 0.0, %v1066
        %v1068 = vpop.f32.mrb[0].mxu0
        %1069 = vdwg.mxu0
        %v1071 = vsel %vm423, %v1067, 0
        %1073 = vmatprep.subr.mxu0 0.0
        %1074 = vmatpush1.msra.mxu0 %v416
        %1075 = vmatprep.subr.mxu0 0.0
        %1076 = vmatpush1.msra.mxu0 0.0
        %1077 = vmatprep.subr.mxu0 0.0
        %1078 = vmatpush1.msra.mxu0 0.0
        %1079 = vmatprep.subr.mxu0 0.0
        %1080 = vmatpush1.msra.mxu0 0.0
        %1081 = vmatprep.subr.mxu0 0.0
        %1082 = vmatpush1.msra.mxu0 0.0
        %1083 = vmatprep.subr.mxu0 0.0
        %1084 = vmatpush1.msra.mxu0 0.0
        %1085 = vmatprep.subr.mxu0 0.0
        %1086 = vmatpush1.msra.mxu0 0.0
        %1087 = vmatprep.subr.mxu0 0.0
        %1088 = vmatpush1.msra.mxu0 0.0
        %1089 = vmatprep.subr.mxu0 0.0
        %1090 = vmatpush1.msra.mxu0 0.0
        %1091 = vmatprep.subr.mxu0 0.0
        %1092 = vmatpush1.msra.mxu0 0.0
        %1093 = vmatprep.subr.mxu0 0.0
        %1094 = vmatpush1.msra.mxu0 0.0
        %1095 = vmatprep.subr.mxu0 0.0
        %1096 = vmatpush1.msra.mxu0 0.0
        %1097 = vmatprep.subr.mxu0 0.0
        %1098 = vmatpush1.msra.mxu0 0.0
        %1099 = vmatprep.subr.mxu0 0.0
        %1100 = vmatpush1.msra.mxu0 0.0
        %1101 = vmatprep.subr.mxu0 0.0
        %1102 = vmatpush1.msra.mxu0 0.0
        %1103 = vmatprep.subr.mxu0 0.0
        %1104 = vmatpush1.msra.mxu0 0.0
        %1105 = vmatprep.subr.mxu0 0.0
        %1106 = vmatpush1.msra.mxu0 0.0
        %1107 = vmatprep.subr.mxu0 0.0
        %1108 = vmatpush1.msra.mxu0 0.0
        %1109 = vmatprep.subr.mxu0 0.0
        %1110 = vmatpush1.msra.mxu0 0.0
        %1111 = vmatprep.subr.mxu0 0.0
        %1112 = vmatpush1.msra.mxu0 0.0
        %1113 = vmatprep.subr.mxu0 0.0
        %1114 = vmatpush1.msra.mxu0 0.0
        %1115 = vmatprep.subr.mxu0 0.0
        %1116 = vmatpush1.msra.mxu0 0.0
        %1117 = vmatprep.subr.mxu0 0.0
        %1118 = vmatpush1.msra.mxu0 0.0
        %1119 = vmatprep.subr.mxu0 0.0
        %1120 = vmatpush1.msra.mxu0 0.0
        %1121 = vmatprep.subr.mxu0 0.0
        %1122 = vmatpush1.msra.mxu0 0.0
        %1123 = vmatprep.subr.mxu0 0.0
        %1124 = vmatpush1.msra.mxu0 0.0
        %1125 = vmatprep.subr.mxu0 0.0
        %1126 = vmatpush1.msra.mxu0 0.0
        %1127 = vmatprep.subr.mxu0 0.0
        %1128 = vmatpush1.msra.mxu0 0.0
        %1129 = vmatprep.subr.mxu0 0.0
        %1130 = vmatpush1.msra.mxu0 0.0
        %1131 = vmatprep.subr.mxu0 0.0
        %1132 = vmatpush1.msra.mxu0 0.0
        %1133 = vmatprep.subr.mxu0 0.0
        %1134 = vmatpush1.msra.mxu0 0.0
        %1135 = vmatprep.subr.mxu0 0.0
        %1136 = vmatpush1.msra.mxu0 0.0
        %1137 = vmatprep.mubr.f32.mxu0 0.0
        %1138 = vmatmul.mubr.f32.gmra.mrb[0].mxu0 %v1071
        %v1139 = vpop.f32.mrb[0].mxu0
        %v1140 = vadd.f32 0.0, %v1139
        %v1141 = vpop.f32.mrb[0].mxu0
        %1142 = vdwg.mxu0
        %v1143 = vadd.f32 %v901, %v1140
        %1144 = vrot.lane.b32.xlu0 %v411, 104
        %v1145 = vpop.permute.xlu0 %1144
        %1146 = vrot.lane.b32.xlu0 %v411, 72
        %v1147 = vpop.permute.xlu0 %1146
        %v1148 = vsel %vm423, %v1145, 0
        %v1150 = vsel %vm423, %v1147, 0
        %1152 = vmatprep.subr.mxu0 0.0
        %1153 = vmatpush1.xpose.msra.mxu0 %v1150
        %1154 = vmatprep.subr.mxu0 0.0
        %1155 = vmatpush1.xpose.msra.mxu0 0.0
        %1156 = vmatprep.subr.mxu0 0.0
        %1157 = vmatpush1.xpose.msra.mxu0 0.0
        %1158 = vmatprep.subr.mxu0 0.0
        %1159 = vmatpush1.xpose.msra.mxu0 0.0
        %1160 = vmatprep.subr.mxu0 0.0
        %1161 = vmatpush1.xpose.msra.mxu0 0.0
        %1162 = vmatprep.subr.mxu0 0.0
        %1163 = vmatpush1.xpose.msra.mxu0 0.0
        %1164 = vmatprep.subr.mxu0 0.0
        %1165 = vmatpush1.xpose.msra.mxu0 0.0
        %1166 = vmatprep.subr.mxu0 0.0
        %1167 = vmatpush1.xpose.msra.mxu0 0.0
        %1168 = vmatprep.subr.mxu0 0.0
        %1169 = vmatpush1.xpose.msra.mxu0 0.0
        %1170 = vmatprep.subr.mxu0 0.0
        %1171 = vmatpush1.xpose.msra.mxu0 0.0
        %1172 = vmatprep.subr.mxu0 0.0
        %1173 = vmatpush1.xpose.msra.mxu0 0.0
        %1174 = vmatprep.subr.mxu0 0.0
        %1175 = vmatpush1.xpose.msra.mxu0 0.0
        %1176 = vmatprep.subr.mxu0 0.0
        %1177 = vmatpush1.xpose.msra.mxu0 0.0
        %1178 = vmatprep.subr.mxu0 0.0
        %1179 = vmatpush1.xpose.msra.mxu0 0.0
        %1180 = vmatprep.subr.mxu0 0.0
        %1181 = vmatpush1.xpose.msra.mxu0 0.0
        %1182 = vmatprep.subr.mxu0 0.0
        %1183 = vmatpush1.xpose.msra.mxu0 0.0
        %1184 = vmatprep.subr.mxu0 0.0
        %1185 = vmatpush1.xpose.msra.mxu0 0.0
        %1186 = vmatprep.subr.mxu0 0.0
        %1187 = vmatpush1.xpose.msra.mxu0 0.0
        %1188 = vmatprep.subr.mxu0 0.0
        %1189 = vmatpush1.xpose.msra.mxu0 0.0
        %1190 = vmatprep.subr.mxu0 0.0
        %1191 = vmatpush1.xpose.msra.mxu0 0.0
        %1192 = vmatprep.subr.mxu0 0.0
        %1193 = vmatpush1.xpose.msra.mxu0 0.0
        %1194 = vmatprep.subr.mxu0 0.0
        %1195 = vmatpush1.xpose.msra.mxu0 0.0
        %1196 = vmatprep.subr.mxu0 0.0
        %1197 = vmatpush1.xpose.msra.mxu0 0.0
        %1198 = vmatprep.subr.mxu0 0.0
        %1199 = vmatpush1.xpose.msra.mxu0 0.0
        %1200 = vmatprep.subr.mxu0 0.0
        %1201 = vmatpush1.xpose.msra.mxu0 0.0
        %1202 = vmatprep.subr.mxu0 0.0
        %1203 = vmatpush1.xpose.msra.mxu0 0.0
        %1204 = vmatprep.subr.mxu0 0.0
        %1205 = vmatpush1.xpose.msra.mxu0 0.0
        %1206 = vmatprep.subr.mxu0 0.0
        %1207 = vmatpush1.xpose.msra.mxu0 0.0
        %1208 = vmatprep.subr.mxu0 0.0
        %1209 = vmatpush1.xpose.msra.mxu0 0.0
        %1210 = vmatprep.subr.mxu0 0.0
        %1211 = vmatpush1.xpose.msra.mxu0 0.0
        %1212 = vmatprep.subr.mxu0 0.0
        %1213 = vmatpush1.xpose.msra.mxu0 0.0
        %1214 = vmatprep.subr.mxu0 0.0
        %1215 = vmatpush1.xpose.msra.mxu0 0.0
        %1216 = vmatprep.mubr.f32.mxu0 0.0
        %1217 = vmatmul.mubr.f32.gmra.mrb[0].mxu0 %v1148
        %v1218 = vpop.f32.mrb[0].mxu0
        %v1219 = vadd.f32 0.0, %v1218
        %v1220 = vpop.f32.mrb[0].mxu0
        %1221 = vdwg.mxu0
        %v1222 = vsel %vm503, -1e+09, %v1219
        %v1223 = vsel %vm423, %v1222, -inf
        %1224 = vmax.xlane.f32.xlu0 %v1223
        %v1225 = vpop.xlane.xlu0 %1224
        %v1226 = vsub.f32 %v1222, %v1225
        %v1227 = vmul.f32 %v1226, 1.442695
        %v1228 = vpow.pop %v1227
        %v1229 = vsel %vm423, %v1228, 0.0
        %1230 = vadd.xlane.f32.xlu0 %v1229
        %v1231 = vpop.xlane.xlu0 %1230
        %v1232 = vrcp.pop %v1231
        %v1233 = vmul.f32 %v1228, %v1232
        %1234 = vrot.lane.b32.xlu0 %v411, 40
        %v1235 = vpop.permute.xlu0 %1234
        %v1238 = vsel %vm423, %v1233, 0
        %1240 = vmatprep.subr.mxu0 0.0
        %1241 = vmatpush1.msra.mxu0 %v1235
        %1242 = vmatprep.subr.mxu0 0.0
        %1243 = vmatpush1.msra.mxu0 0.0
        %1244 = vmatprep.subr.mxu0 0.0
        %1245 = vmatpush1.msra.mxu0 0.0
        %1246 = vmatprep.subr.mxu0 0.0
        %1247 = vmatpush1.msra.mxu0 0.0
        %1248 = vmatprep.subr.mxu0 0.0
        %1249 = vmatpush1.msra.mxu0 0.0
        %1250 = vmatprep.subr.mxu0 0.0
        %1251 = vmatpush1.msra.mxu0 0.0
        %1252 = vmatprep.subr.mxu0 0.0
        %1253 = vmatpush1.msra.mxu0 0.0
        %1254 = vmatprep.subr.mxu0 0.0
        %1255 = vmatpush1.msra.mxu0 0.0
        %1256 = vmatprep.subr.mxu0 0.0
        %1257 = vmatpush1.msra.mxu0 0.0
        %1258 = vmatprep.subr.mxu0 0.0
        %1259 = vmatpush1.msra.mxu0 0.0
        %1260 = vmatprep.subr.mxu0 0.0
        %1261 = vmatpush1.msra.mxu0 0.0
        %1262 = vmatprep.subr.mxu0 0.0
        %1263 = vmatpush1.msra.mxu0 0.0
        %1264 = vmatprep.subr.mxu0 0.0
        %1265 = vmatpush1.msra.mxu0 0.0
        %1266 = vmatprep.subr.mxu0 0.0
        %1267 = vmatpush1.msra.mxu0 0.0
        %1268 = vmatprep.subr.mxu0 0.0
        %1269 = vmatpush1.msra.mxu0 0.0
        %1270 = vmatprep.subr.mxu0 0.0
        %1271 = vmatpush1.msra.mxu0 0.0
        %1272 = vmatprep.subr.mxu0 0.0
        %1273 = vmatpush1.msra.mxu0 0.0
        %1274 = vmatprep.subr.mxu0 0.0
        %1275 = vmatpush1.msra.mxu0 0.0
        %1276 = vmatprep.subr.mxu0 0.0
        %1277 = vmatpush1.msra.mxu0 0.0
        %1278 = vmatprep.subr.mxu0 0.0
        %1279 = vmatpush1.msra.mxu0 0.0
        %1280 = vmatprep.subr.mxu0 0.0
        %1281 = vmatpush1.msra.mxu0 0.0
        %1282 = vmatprep.subr.mxu0 0.0
        %1283 = vmatpush1.msra.mxu0 0.0
        %1284 = vmatprep.subr.mxu0 0.0
        %1285 = vmatpush1.msra.mxu0 0.0
        %1286 = vmatprep.subr.mxu0 0.0
        %1287 = vmatpush1.msra.mxu0 0.0
        %1288 = vmatprep.subr.mxu0 0.0
        %1289 = vmatpush1.msra.mxu0 0.0
        %1290 = vmatprep.subr.mxu0 0.0
        %1291 = vmatpush1.msra.mxu0 0.0
        %1292 = vmatprep.subr.mxu0 0.0
        %1293 = vmatpush1.msra.mxu0 0.0
        %1294 = vmatprep.subr.mxu0 0.0
        %1295 = vmatpush1.msra.mxu0 0.0
        %1296 = vmatprep.subr.mxu0 0.0
        %1297 = vmatpush1.msra.mxu0 0.0
        %1298 = vmatprep.subr.mxu0 0.0
        %1299 = vmatpush1.msra.mxu0 0.0
        %1300 = vmatprep.subr.mxu0 0.0
        %1301 = vmatpush1.msra.mxu0 0.0
        %1302 = vmatprep.subr.mxu0 0.0
        %1303 = vmatpush1.msra.mxu0 0.0
        %1304 = vmatprep.mubr.f32.mxu0 0.0
        %1305 = vmatmul.mubr.f32.gmra.mrb[0].mxu0 %v1238
        %v1306 = vpop.f32.mrb[0].mxu0
        %v1307 = vadd.f32 0.0, %v1306
        %v1308 = vpop.f32.mrb[0].mxu0
        %1309 = vdwg.mxu0
        %v1311 = vsel %vm423, %v1307, 0
        %1313 = vmatprep.subr.mxu0 0.0
        %1314 = vmatpush1.msra.mxu0 %v417
        %1315 = vmatprep.subr.mxu0 0.0
        %1316 = vmatpush1.msra.mxu0 0.0
        %1317 = vmatprep.subr.mxu0 0.0
        %1318 = vmatpush1.msra.mxu0 0.0
        %1319 = vmatprep.subr.mxu0 0.0
        %1320 = vmatpush1.msra.mxu0 0.0
        %1321 = vmatprep.subr.mxu0 0.0
        %1322 = vmatpush1.msra.mxu0 0.0
        %1323 = vmatprep.subr.mxu0 0.0
        %1324 = vmatpush1.msra.mxu0 0.0
        %1325 = vmatprep.subr.mxu0 0.0
        %1326 = vmatpush1.msra.mxu0 0.0
        %1327 = vmatprep.subr.mxu0 0.0
        %1328 = vmatpush1.msra.mxu0 0.0
        %1329 = vmatprep.subr.mxu0 0.0
        %1330 = vmatpush1.msra.mxu0 0.0
        %1331 = vmatprep.subr.mxu0 0.0
        %1332 = vmatpush1.msra.mxu0 0.0
        %1333 = vmatprep.subr.mxu0 0.0
        %1334 = vmatpush1.msra.mxu0 0.0
        %1335 = vmatprep.subr.mxu0 0.0
        %1336 = vmatpush1.msra.mxu0 0.0
        %1337 = vmatprep.subr.mxu0 0.0
        %1338 = vmatpush1.msra.mxu0 0.0
        %1339 = vmatprep.subr.mxu0 0.0
        %1340 = vmatpush1.msra.mxu0 0.0
        %1341 = vmatprep.subr.mxu0 0.0
        %1342 = vmatpush1.msra.mxu0 0.0
        %1343 = vmatprep.subr.mxu0 0.0
        %1344 = vmatpush1.msra.mxu0 0.0
        %1345 = vmatprep.subr.mxu0 0.0
        %1346 = vmatpush1.msra.mxu0 0.0
        %1347 = vmatprep.subr.mxu0 0.0
        %1348 = vmatpush1.msra.mxu0 0.0
        %1349 = vmatprep.subr.mxu0 0.0
        %1350 = vmatpush1.msra.mxu0 0.0
        %1351 = vmatprep.subr.mxu0 0.0
        %1352 = vmatpush1.msra.mxu0 0.0
        %1353 = vmatprep.subr.mxu0 0.0
        %1354 = vmatpush1.msra.mxu0 0.0
        %1355 = vmatprep.subr.mxu0 0.0
        %1356 = vmatpush1.msra.mxu0 0.0
        %1357 = vmatprep.subr.mxu0 0.0
        %1358 = vmatpush1.msra.mxu0 0.0
        %1359 = vmatprep.subr.mxu0 0.0
        %1360 = vmatpush1.msra.mxu0 0.0
        %1361 = vmatprep.subr.mxu0 0.0
        %1362 = vmatpush1.msra.mxu0 0.0
        %1363 = vmatprep.subr.mxu0 0.0
        %1364 = vmatpush1.msra.mxu0 0.0
        %1365 = vmatprep.subr.mxu0 0.0
        %1366 = vmatpush1.msra.mxu0 0.0
        %1367 = vmatprep.subr.mxu0 0.0
        %1368 = vmatpush1.msra.mxu0 0.0
        %1369 = vmatprep.subr.mxu0 0.0
        %1370 = vmatpush1.msra.mxu0 0.0
        %1371 = vmatprep.subr.mxu0 0.0
        %1372 = vmatpush1.msra.mxu0 0.0
        %1373 = vmatprep.subr.mxu0 0.0
        %1374 = vmatpush1.msra.mxu0 0.0
        %1375 = vmatprep.subr.mxu0 0.0
        %1376 = vmatpush1.msra.mxu0 0.0
        %1377 = vmatprep.mubr.f32.mxu0 0.0
        %1378 = vmatmul.mubr.f32.gmra.mrb[0].mxu0 %v1311
        %v1379 = vpop.f32.mrb[0].mxu0
        %v1380 = vadd.f32 0.0, %v1379
        %v1381 = vpop.f32.mrb[0].mxu0
        %1382 = vdwg.mxu0
        %v1383 = vadd.f32 %v1143, %v1380
        %v1384 = vadd.f32 %v335, %v1383
        %v1385 = vsel %vm340, %v1384, 0.0
        %1386 = vadd.xlane.f32.xlu0 %v1385
        %v1387 = vpop.xlane.xlu0 %1386
        %v1388 = vrcp.pop 32.0
        %v1389 = vmul.f32 %v1387, %v1388
        %v1390 = vsub.f32 %v1384, %v1389
        %v1391 = vmul.f32 %v1390, %v1390
        %v1392 = vsel %vm340, %v1391, 0.0
        %1393 = vadd.xlane.f32.xlu0 %v1392
        %v1394 = vpop.xlane.xlu0 %1393
        %v1395 = vmul.f32 %v1394, %v1388
        %v1396 = vadd.f32 %v1395, 1e-05
        %v1397 = vrsqrt.pop %v1396
        %v1398 = vmul.f32 %v1390, %v1397
        %v1399 = vld [vmem:[%s6] sm:$0x1]
        %v1401 = vlaneseq
        %v1402 = vshrl.u32 %v1401, 7
        %v1403 = vsub.s32 0, %v1402
        %v1404 = vrot.slane %v1399, %v1403
        %v1406 = vmul.f32 %v1398, %v1404
        %v1407 = vld [vmem:[%s7] sm:$0x1]
        %v1409 = vlaneseq
        %v1410 = vshrl.u32 %v1409, 7
        %v1411 = vsub.s32 0, %v1410
        %v1412 = vrot.slane %v1407, %v1411
        %v1414 = vadd.f32 %v1406, %v1412
        %v1415 = vld [vmem:[%s4] sm:$0xff]
        %v1416 = vld [vmem:[%s4 + $0x8] sm:$0xff]
        %v1417 = vld [vmem:[%s4 + $0x10] sm:$0xff]
        %v1418 = vld [vmem:[%s4 + $0x18] sm:$0xff]
        %v1420 = vsel %vm340, %v1414, 0
        %1422 = vmatprep.subr.mxu0 0.0
        %1423 = vmatpush1.msra.mxu0 %v1415
        %1424 = vmatprep.subr.mxu0 0.0
        %1425 = vmatpush1.msra.mxu0 %v1416
        %1426 = vmatprep.subr.mxu0 0.0
        %1427 = vmatpush1.msra.mxu0 %v1417
        %1428 = vmatprep.subr.mxu0 0.0
        %1429 = vmatpush1.msra.mxu0 %v1418
        %1430 = vmatprep.subr.mxu0 0.0
        %1431 = vmatpush1.msra.mxu0 0.0
        %1432 = vmatprep.subr.mxu0 0.0
        %1433 = vmatpush1.msra.mxu0 0.0
        %1434 = vmatprep.subr.mxu0 0.0
        %1435 = vmatpush1.msra.mxu0 0.0
        %1436 = vmatprep.subr.mxu0 0.0
        %1437 = vmatpush1.msra.mxu0 0.0
        %1438 = vmatprep.subr.mxu0 0.0
        %1439 = vmatpush1.msra.mxu0 0.0
        %1440 = vmatprep.subr.mxu0 0.0
        %1441 = vmatpush1.msra.mxu0 0.0
        %1442 = vmatprep.subr.mxu0 0.0
        %1443 = vmatpush1.msra.mxu0 0.0
        %1444 = vmatprep.subr.mxu0 0.0
        %1445 = vmatpush1.msra.mxu0 0.0
        %1446 = vmatprep.subr.mxu0 0.0
        %1447 = vmatpush1.msra.mxu0 0.0
        %1448 = vmatprep.subr.mxu0 0.0
        %1449 = vmatpush1.msra.mxu0 0.0
        %1450 = vmatprep.subr.mxu0 0.0
        %1451 = vmatpush1.msra.mxu0 0.0
        %1452 = vmatprep.subr.mxu0 0.0
        %1453 = vmatpush1.msra.mxu0 0.0
        %1454 = vmatprep.subr.mxu0 0.0
        %1455 = vmatpush1.msra.mxu0 0.0
        %1456 = vmatprep.subr.mxu0 0.0
        %1457 = vmatpush1.msra.mxu0 0.0
        %1458 = vmatprep.subr.mxu0 0.0
        %1459 = vmatpush1.msra.mxu0 0.0
        %1460 = vmatprep.subr.mxu0 0.0
        %1461 = vmatpush1.msra.mxu0 0.0
        %1462 = vmatprep.subr.mxu0 0.0
        %1463 = vmatpush1.msra.mxu0 0.0
        %1464 = vmatprep.subr.mxu0 0.0
        %1465 = vmatpush1.msra.mxu0 0.0
        %1466 = vmatprep.subr.mxu0 0.0
        %1467 = vmatpush1.msra.mxu0 0.0
        %1468 = vmatprep.subr.mxu0 0.0
        %1469 = vmatpush1.msra.mxu0 0.0
        %1470 = vmatprep.subr.mxu0 0.0
        %1471 = vmatpush1.msra.mxu0 0.0
        %1472 = vmatprep.subr.mxu0 0.0
        %1473 = vmatpush1.msra.mxu0 0.0
        %1474 = vmatprep.subr.mxu0 0.0
        %1475 = vmatpush1.msra.mxu0 0.0
        %1476 = vmatprep.subr.mxu0 0.0
        %1477 = vmatpush1.msra.mxu0 0.0
        %1478 = vmatprep.subr.mxu0 0.0
        %1479 = vmatpush1.msra.mxu0 0.0
        %1480 = vmatprep.subr.mxu0 0.0
        %1481 = vmatpush1.msra.mxu0 0.0
        %1482 = vmatprep.subr.mxu0 0.0
        %1483 = vmatpush1.msra.mxu0 0.0
        %1484 = vmatprep.subr.mxu0 0.0
        %1485 = vmatpush1.msra.mxu0 0.0
        %1486 = vmatprep.mubr.f32.mxu0 0.0
        %1487 = vmatmul.mubr.f32.gmra.mrb[0].mxu0 %v1420
        %v1488 = vpop.f32.mrb[0].mxu0
        %v1489 = vadd.f32 0.0, %v1488
        %v1490 = vpop.f32.mrb[0].mxu0
        %1491 = vdwg.mxu0
        %v1492 = vmax.f32 %v1489, 0.0
        %v1493 = vld [vmem:[%s5] sm:$0xff]
        %v1494 = vld [vmem:[%s5 + $0x8] sm:$0xff]
        %v1495 = vld [vmem:[%s5 + $0x10] sm:$0xff]
        %v1496 = vld [vmem:[%s5 + $0x18] sm:$0xff]
        %v1497 = vld [vmem:[%s5 + $0x20] sm:$0xff]
        %v1498 = vld [vmem:[%s5 + $0x28] sm:$0xff]
        %v1499 = vld [vmem:[%s5 + $0x30] sm:$0xff]
        %v1500 = vld [vmem:[%s5 + $0x38] sm:$0xff]
        %vm1501 = vcmask 523264
        %v1503 = vsel %vm1501, %v1492, 0
        %1505 = vmatprep.subr.mxu0 0.0
        %1506 = vmatpush1.msra.mxu0 %v1493
        %1507 = vmatprep.subr.mxu0 0.0
        %1508 = vmatpush1.msra.mxu0 %v1494
        %1509 = vmatprep.subr.mxu0 0.0
        %1510 = vmatpush1.msra.mxu0 %v1495
        %1511 = vmatprep.subr.mxu0 0.0
        %1512 = vmatpush1.msra.mxu0 %v1496
        %1513 = vmatprep.subr.mxu0 0.0
        %1514 = vmatpush1.msra.mxu0 %v1497
        %1515 = vmatprep.subr.mxu0 0.0
        %1516 = vmatpush1.msra.mxu0 %v1498
        %1517 = vmatprep.subr.mxu0 0.0
        %1518 = vmatpush1.msra.mxu0 %v1499
        %1519 = vmatprep.subr.mxu0 0.0
        %1520 = vmatpush1.msra.mxu0 %v1500
        %1521 = vmatprep.subr.mxu0 0.0
        %1522 = vmatpush1.msra.mxu0 0.0
        %1523 = vmatprep.subr.mxu0 0.0
        %1524 = vmatpush1.msra.mxu0 0.0
        %1525 = vmatprep.subr.mxu0 0.0
        %1526 = vmatpush1.msra.mxu0 0.0
        %1527 = vmatprep.subr.mxu0 0.0
        %1528 = vmatpush1.msra.mxu0 0.0
        %1529 = vmatprep.subr.mxu0 0.0
        %1530 = vmatpush1.msra.mxu0 0.0
        %1531 = vmatprep.subr.mxu0 0.0
        %1532 = vmatpush1.msra.mxu0 0.0
        %1533 = vmatprep.subr.mxu0 0.0
        %1534 = vmatpush1.msra.mxu0 0.0
        %1535 = vmatprep.subr.mxu0 0.0
        %1536 = vmatpush1.msra.mxu0 0.0
        %1537 = vmatprep.subr.mxu0 0.0
        %1538 = vmatpush1.msra.mxu0 0.0
        %1539 = vmatprep.subr.mxu0 0.0
        %1540 = vmatpush1.msra.mxu0 0.0
        %1541 = vmatprep.subr.mxu0 0.0
        %1542 = vmatpush1.msra.mxu0 0.0
        %1543 = vmatprep.subr.mxu0 0.0
        %1544 = vmatpush1.msra.mxu0 0.0
        %1545 = vmatprep.subr.mxu0 0.0
        %1546 = vmatpush1.msra.mxu0 0.0
        %1547 = vmatprep.subr.mxu0 0.0
        %1548 = vmatpush1.msra.mxu0 0.0
        %1549 = vmatprep.subr.mxu0 0.0
        %1550 = vmatpush1.msra.mxu0 0.0
        %1551 = vmatprep.subr.mxu0 0.0
        %1552 = vmatpush1.msra.mxu0 0.0
        %1553 = vmatprep.subr.mxu0 0.0
        %1554 = vmatpush1.msra.mxu0 0.0
        %1555 = vmatprep.subr.mxu0 0.0
        %1556 = vmatpush1.msra.mxu0 0.0
        %1557 = vmatprep.subr.mxu0 0.0
        %1558 = vmatpush1.msra.mxu0 0.0
        %1559 = vmatprep.subr.mxu0 0.0
        %1560 = vmatpush1.msra.mxu0 0.0
        %1561 = vmatprep.subr.mxu0 0.0
        %1562 = vmatpush1.msra.mxu0 0.0
        %1563 = vmatprep.subr.mxu0 0.0
        %1564 = vmatpush1.msra.mxu0 0.0
        %1565 = vmatprep.subr.mxu0 0.0
        %1566 = vmatpush1.msra.mxu0 0.0
        %1567 = vmatprep.subr.mxu0 0.0
        %1568 = vmatpush1.msra.mxu0 0.0
        %1569 = vmatprep.mubr.f32.mxu0 0.0
        %1570 = vmatmul.mubr.f32.gmra.mrb[0].mxu0 %v1503
        %v1571 = vpop.f32.mrb[0].mxu0
        %v1572 = vadd.f32 0.0, %v1571
        %v1573 = vpop.f32.mrb[0].mxu0
        %1574 = vdwg.mxu0
        %v1575 = vadd.f32 %v1384, %v1572
        %1576 = vst.msk [vmem:[%s331] sm:$0xff] %vm340, %v1575
        %s1577 = sand.u32 %s211, 1
        %s1578 = scalar_lea.sflag [#allocation4], %s1577
        %s1579 = sand.u32 %s211, 1
        %s1580 = smul.addr %s1579, 8
        %s1581 = scalar_lea.vmem [#allocation5], %s1580
        // Predicated region
        $region57: #{tpu_custom_call.1} parent=51 // pred_check
          %p1582 = pneg %p221
        $region58: #{tpu_custom_call.1} parent=51 // pred_check_branch
          %1584 = sbr.rel (%p1582) target = $region60
        $region59: #{tpu_custom_call.1} parent=51 // pred_region
          %s1586 = ssub.s32 128, 128
          %1587 = vsyncadd %s1578, %s1586
          %s1588 = smul.addr %s25, 128
          %s1589 = scalar_lea.hbm %s8, %s1588
          %s1591 = sshll.u32 %s1581, 4
          %s1592 = int_to_ptr.vmem [resolvable:$true] %s1591
          %1594 = dma.vmem_to_hbm [thread:$0]  %s1592, 128, %s1589, %s1578
        $region60: #{tpu_custom_call.1} parent=51 // pred_fallthru
          _
      $region52: #{tpu_custom_call.1} parent=5 // pred_fallthru
        _
      %p1595 = scmp.le.s32.totalorder 2, %s20
      // Predicated region
      $region61: #{tpu_custom_call.1} parent=5 // pred_check
        %p1596 = pneg %p1595
      $region62: #{tpu_custom_call.1} parent=5 // pred_check_branch
        %1598 = sbr.rel (%p1596) target = $region64
      $region63: #{tpu_custom_call.1} parent=5 // pred_region
        %s1599 = ssub.s32 %s20, 2
        // Predicated region
        $region65: #{tpu_custom_call.1} parent=63 // pred_check
          %p1600 = pneg %p227
        $region66: #{tpu_custom_call.1} parent=63 // pred_check_branch
          %1602 = sbr.rel (%p1600) target = $region68
        $region67: #{tpu_custom_call.1} parent=63 // pred_region
          %s1603 = sand.u32 %s212, 1
          %s1604 = scalar_lea.sflag [#allocation4], %s1603
          %s1605 = sand.u32 %s212, 1
          %s1606 = smul.addr %s1605, 8
          %s1607 = scalar_lea.vmem [#allocation5], %s1606
          %1608 = dma.done %s1604, 128
        $region68: #{tpu_custom_call.1} parent=63 // pred_fallthru
          _
      $region64: #{tpu_custom_call.1} parent=5 // pred_fallthru
        _
    $region6: #{tpu_custom_call.1} parent=1 // loop_footer
      %s24 = sadd.s32 1, %s20
    $region7: #{tpu_custom_call.1} parent=1 // loop_footer_branch
      %19 = sbr.rel target = $region3
    $region8: #{tpu_custom_call.1} parent=1 // loop_exit
      _
    %1609 = vsyncpa [#allocation3], 1
    %s1610 = scalar_lea.sflag [#allocation3], 1
    %1611 = vsyncpa %s1610, 1
    %1612 = vsyncpa [#allocation4], 1
    %s1613 = scalar_lea.sflag [#allocation4], 1
    %1614 = vsyncpa %s1613, 1

</llo_original>
